<compile_context>
chip_gen: v6e
topology: v6e:2x2x1
jax: 0.10.0
libtpu: 0.0.40
codegen_flags: <defaults>
</compile_context>

<pallas_src>
import math
import jax
import jax.numpy as jnp
from jax.experimental import pallas as pl
from jax.experimental.pallas import tpu as pltpu


def _make_siren_kernel(n_hidden, final_reduce):
    """Fused SIREN-MLP kernel (lane-major).

    Kernel args: (x_ref, w0, b0, w1, b1, ..., w_final, b_final, out_ref)
      x_ref : (dim_in, TB)            activations, batch on lanes
      w_i   : (d_out_i, d_in_i)       hidden weights, w0 already folded in
      b_i   : (d_out_i, 1)            hidden biases,  w0 already folded in
      final : if final_reduce, w_final is passed pre-transposed as (H, 1) and
              the projection is a VPU multiply + sublane reduce; otherwise
              w_final is (dim_out, H) and an MXU dot is used.
    """

    def kernel(x_ref, *refs):
        out_ref = refs[-1]
        p = refs[:-1]
        h = x_ref[...]                          # (d_in0, TB) f32
        for i in range(n_hidden):
            w = p[2 * i][...]                   # (H, d_in)
            b = p[2 * i + 1][...]               # (H, 1)
            # MXU is idle in this VALU-bound kernel; route even the tiny
            # K=dim_in contraction through the MXU.
            z = jnp.dot(w, h, preferred_element_type=jnp.float32) + b
            h = jnp.sin(z)                      # w0 folded into w/b host-side
        if final_reduce:
            wft = p[2 * n_hidden][...]          # (H, 1)  (pre-transposed)
            bf = p[2 * n_hidden + 1][...]       # (1, 1)
            # dim_out == 1: VPU multiply + sublane (XLU) reduce; avoids an
            # M=1 MXU matmul drain on the tail of every grid step.
            out_ref[...] = jnp.sum(h * wft, axis=0, keepdims=True) + bf
        else:
            wf = p[2 * n_hidden][...]           # (dim_out, H)
            bf = p[2 * n_hidden + 1][...]       # (dim_out, 1)
            out_ref[...] = jnp.dot(wf, h, preferred_element_type=jnp.float32) + bf

    return kernel


def fold_w0_into_params(params, w0_hidden):
    """Fold each hidden layer's w0 into its (W, b). Exact (tiny arrays)."""
    n_hidden = len(w0_hidden)
    folded = []
    for i, (W, b) in enumerate(params):
        if i < n_hidden:
            w0 = float(w0_hidden[i])
            folded.append((w0 * W, w0 * b))
        else:
            folded.append((W, b))
    return folded


def _pick_block_b(N, cap=8192):
    """Lane-dense batch tile: fat enough to amortize per-step overhead,
    capped so whole-tile intermediates stay well under v7x's scoped VMEM,
    and an even number of >=2 steps when N allows (balances v7x's 2 TCs)."""
    if N < 256:
        return 128
    nb = max(2, pl.cdiv(N, cap))
    if nb % 2:
        nb += 1
    return max(128, min(cap, pl.cdiv(pl.cdiv(N, nb), 128) * 128))


def mlp_ode_siren_apply_lanes(xt, folded_params, *, block_b=None,
                              vmem_limit_bytes=None):
    """Lane-major entry point (use this inside ODE-solver loops).

    xt: (dim_in, N) f32, batch on lanes.
    folded_params: output of fold_w0_into_params.
    Returns (dim_out, N) f32.
    """
    xt = xt.astype(jnp.float32)
    dim_in, N = xt.shape
    n_hidden = len(folded_params) - 1
    dim_out = folded_params[-1][0].shape[0]
    final_reduce = (dim_out == 1)

    if block_b is None:
        block_b = _pick_block_b(N)
    n_blocks = pl.cdiv(N, block_b)

    kernel = _make_siren_kernel(n_hidden, final_reduce)

    flat = []
    in_specs = [pl.BlockSpec((dim_in, block_b), lambda i: (0, i))]
    for li, (W, b) in enumerate(folded_params):
        if li == n_hidden and final_reduce:
            Wk = W.T  # (H, 1): kernel does mul + sublane-reduce, no reshape needed
        else:
            Wk = W
        flat.append(Wk)
        in_specs.append(pl.BlockSpec(Wk.shape, lambda i: (0, 0)))
        flat.append(b)
        in_specs.append(pl.BlockSpec(b.shape, lambda i: (0, 0)))

    out_t = pl.pallas_call(
        kernel,
        out_shape=jax.ShapeDtypeStruct((dim_out, N), jnp.float32),
        grid=(n_blocks,),
        in_specs=in_specs,
        out_specs=pl.BlockSpec((dim_out, block_b), lambda i: (0, i)),
        compiler_params=pltpu.CompilerParams(
            dimension_semantics=("parallel",),
            vmem_limit_bytes=vmem_limit_bytes),
    )(xt, *flat)
    return out_t


def mlp_ode_siren_forward(x, params, w0_hidden, *, block_b=None,
                          vmem_limit_bytes=None):
    """Batch-major wrapper matching the PyTorch module.

    x: (N, dim_in) f32.  params: list of (W (d_out, d_in), b (d_out, 1)).
    Returns (N, dim_out) f32.
    """
    folded = fold_w0_into_params(params, w0_hidden)
    xt = x.astype(jnp.float32).T                    # (dim_in, N), no padding
    out_t = mlp_ode_siren_apply_lanes(
        xt, folded, block_b=block_b, vmem_limit_bytes=vmem_limit_bytes)
    return out_t.T


def init_mlp_ode_siren_params(key, num_layers, dim_hidden, dim_in, dim_out,
                              w0=1.0, w0_initial=30.0, c=6.0):
    """SIREN init (uniform(-w_std, w_std)), matching lucidrains' Siren layer.

    Weights stored PyTorch-style as (d_out, d_in); biases as (d_out, 1).
    """
    params = []
    w0_hidden = []
    layer_dims = []
    for i in range(num_layers):
        is_first = i == 0
        d_in = dim_in if is_first else dim_hidden
        layer_w0 = w0_initial if is_first else w0
        w_std = (1.0 / d_in) if is_first else (math.sqrt(c / d_in) / layer_w0)
        layer_dims.append((d_in, dim_hidden, w_std))
        w0_hidden.append(layer_w0)
    # Final layer (identity activation); init uses w0=self.w0, is_first=False.
    w_std_f = math.sqrt(c / dim_hidden) / w0
    layer_dims.append((dim_hidden, dim_out, w_std_f))

    keys = jax.random.split(key, 2 * len(layer_dims))
    for li, (d_in, d_out, w_std) in enumerate(layer_dims):
        kw, kb = keys[2 * li], keys[2 * li + 1]
        W = jax.random.uniform(kw, (d_out, d_in), jnp.float32,
                               minval=-w_std, maxval=w_std)
        b = jax.random.uniform(kb, (d_out, 1), jnp.float32,
                               minval=-w_std, maxval=w_std)
        params.append((W, b))
    return params, w0_hidden


def mlp_ode_siren_reference(x, params, w0_hidden):
    """Pure-JAX reference with the original (batch-major) math."""
    h = x
    for i, w0 in enumerate(w0_hidden):
        W, b = params[i]
        h = jnp.sin(w0 * (h @ W.T + b[:, 0]))
    Wf, bf = params[-1]
    return h @ Wf.T + bf[:, 0]


if __name__ == "__main__":
    # Module config: 3 hidden SIREN layers + final linear (identity) layer.
    num_layers = 3
    dim_hidden = 32
    dim_in = 2
    dim_out = 1
    w0, w0_initial = 1.0, 30.0

    N = 256  # batch of coordinate points

    key = jax.random.PRNGKey(0)
    kx, kp = jax.random.split(key)
    x = jax.random.uniform(kx, (N, dim_in), jnp.float32, minval=-1.0, maxval=1.0)

    params, w0_hidden = init_mlp_ode_siren_params(
        kp, num_layers, dim_hidden, dim_in, dim_out,
        w0=w0, w0_initial=w0_initial)

    out = mlp_ode_siren_forward(x, params, w0_hidden)
    out = jax.block_until_ready(out)

    ref = mlp_ode_siren_reference(x, params, w0_hidden)
    assert out.shape == (N, dim_out)
    assert jnp.allclose(out, ref, atol=5e-5, rtol=5e-5), "mismatch vs reference"

    print("KERNEL_OK")
</pallas_src>

<mosaic_0001>
module attributes {stable_mosaic.version = 11 : i64} {
  func.func @kernel(%arg0: i32, %arg1: memref<2x128xf32, #tpu.memory_space<vmem>>, %arg2: memref<32x2xf32, #tpu.memory_space<vmem>>, %arg3: memref<32x1xf32, #tpu.memory_space<vmem>>, %arg4: memref<32x32xf32, #tpu.memory_space<vmem>>, %arg5: memref<32x1xf32, #tpu.memory_space<vmem>>, %arg6: memref<32x32xf32, #tpu.memory_space<vmem>>, %arg7: memref<32x1xf32, #tpu.memory_space<vmem>>, %arg8: memref<32x1xf32, #tpu.memory_space<vmem>>, %arg9: memref<1x1xf32, #tpu.memory_space<vmem>>, %arg10: memref<1x128xf32, #tpu.memory_space<vmem>>) attributes {dimension_semantics = [#tpu.dimension_semantics<parallel>], iteration_bounds = array<i64: 2>, scalar_prefetch = 0 : i64, scratch_operands = 0 : i64, tpu.core_type = #tpu.core_type<tc>, window_params = [{transform_indices = @transform_0, window_bounds = array<i64: 2, 128>}, {pipeline_mode = #tpu.pipeline_mode<synchronous>, transform_indices = @transform_1, window_bounds = array<i64: 32, 2>}, {pipeline_mode = #tpu.pipeline_mode<synchronous>, transform_indices = @transform_2, window_bounds = array<i64: 32, 1>}, {pipeline_mode = #tpu.pipeline_mode<synchronous>, transform_indices = @transform_3, window_bounds = array<i64: 32, 32>}, {pipeline_mode = #tpu.pipeline_mode<synchronous>, transform_indices = @transform_4, window_bounds = array<i64: 32, 1>}, {pipeline_mode = #tpu.pipeline_mode<synchronous>, transform_indices = @transform_5, window_bounds = array<i64: 32, 32>}, {pipeline_mode = #tpu.pipeline_mode<synchronous>, transform_indices = @transform_6, window_bounds = array<i64: 32, 1>}, {pipeline_mode = #tpu.pipeline_mode<synchronous>, transform_indices = @transform_7, window_bounds = array<i64: 32, 1>}, {pipeline_mode = #tpu.pipeline_mode<synchronous>, transform_indices = @transform_8, window_bounds = array<i64: 1, 1>}, {transform_indices = @transform_9, window_bounds = array<i64: 1, 128>}]} {
    %c0 = arith.constant 0 : index
    %c0_0 = arith.constant 0 : index
    %0 = vector.load %arg1[%c0, %c0_0] : memref<2x128xf32, #tpu.memory_space<vmem>>, vector<2x128xf32>
    %c0_1 = arith.constant 0 : index
    %c0_2 = arith.constant 0 : index
    %1 = vector.load %arg2[%c0_1, %c0_2] : memref<32x2xf32, #tpu.memory_space<vmem>>, vector<32x2xf32>
    %c0_3 = arith.constant 0 : index
    %c0_4 = arith.constant 0 : index
    %2 = vector.load %arg3[%c0_3, %c0_4] : memref<32x1xf32, #tpu.memory_space<vmem>>, vector<32x1xf32>
    %cst = arith.constant dense<0.000000e+00> : vector<32x128xf32>
    %3 = tpu.matmul %1, %0, %cst {dimension_numbers = #tpu.dot_dimension_numbers<[1], [0], [0], [1], [0, 0, 1, 1], [], []>} : vector<32x2xf32>, vector<2x128xf32>, vector<32x128xf32> -> vector<32x128xf32>
    %4 = vector.broadcast %2 : vector<32x1xf32> to vector<32x128xf32>
    %5 = arith.addf %3, %4 : vector<32x128xf32>
    %6 = math.sin %5 : vector<32x128xf32>
    %c0_5 = arith.constant 0 : index
    %c0_6 = arith.constant 0 : index
    %7 = vector.load %arg4[%c0_5, %c0_6] : memref<32x32xf32, #tpu.memory_space<vmem>>, vector<32x32xf32>
    %c0_7 = arith.constant 0 : index
    %c0_8 = arith.constant 0 : index
    %8 = vector.load %arg5[%c0_7, %c0_8] : memref<32x1xf32, #tpu.memory_space<vmem>>, vector<32x1xf32>
    %cst_9 = arith.constant dense<0.000000e+00> : vector<32x128xf32>
    %9 = tpu.matmul %7, %6, %cst_9 {dimension_numbers = #tpu.dot_dimension_numbers<[1], [0], [0], [1], [0, 0, 1, 1], [], []>} : vector<32x32xf32>, vector<32x128xf32>, vector<32x128xf32> -> vector<32x128xf32>
    %10 = vector.broadcast %8 : vector<32x1xf32> to vector<32x128xf32>
    %11 = arith.addf %9, %10 : vector<32x128xf32>
    %12 = math.sin %11 : vector<32x128xf32>
    %c0_10 = arith.constant 0 : index
    %c0_11 = arith.constant 0 : index
    %13 = vector.load %arg6[%c0_10, %c0_11] : memref<32x32xf32, #tpu.memory_space<vmem>>, vector<32x32xf32>
    %c0_12 = arith.constant 0 : index
    %c0_13 = arith.constant 0 : index
    %14 = vector.load %arg7[%c0_12, %c0_13] : memref<32x1xf32, #tpu.memory_space<vmem>>, vector<32x1xf32>
    %cst_14 = arith.constant dense<0.000000e+00> : vector<32x128xf32>
    %15 = tpu.matmul %13, %12, %cst_14 {dimension_numbers = #tpu.dot_dimension_numbers<[1], [0], [0], [1], [0, 0, 1, 1], [], []>} : vector<32x32xf32>, vector<32x128xf32>, vector<32x128xf32> -> vector<32x128xf32>
    %16 = vector.broadcast %14 : vector<32x1xf32> to vector<32x128xf32>
    %17 = arith.addf %15, %16 : vector<32x128xf32>
    %18 = math.sin %17 : vector<32x128xf32>
    %c0_15 = arith.constant 0 : index
    %c0_16 = arith.constant 0 : index
    %19 = vector.load %arg8[%c0_15, %c0_16] : memref<32x1xf32, #tpu.memory_space<vmem>>, vector<32x1xf32>
    %c0_17 = arith.constant 0 : index
    %c0_18 = arith.constant 0 : index
    %20 = vector.load %arg9[%c0_17, %c0_18] : memref<1x1xf32, #tpu.memory_space<vmem>>, vector<1x1xf32>
    %21 = vector.broadcast %19 : vector<32x1xf32> to vector<32x128xf32>
    %22 = arith.mulf %18, %21 : vector<32x128xf32>
    %cst_19 = arith.constant dense<0.000000e+00> : vector<128xf32>
    %23 = vector.multi_reduction <add>, %22, %cst_19 [0] : vector<32x128xf32> to vector<128xf32>
    %24 = vector.shape_cast %23 : vector<128xf32> to vector<1x128xf32>
    %25 = vector.broadcast %20 : vector<1x1xf32> to vector<1x128xf32>
    %26 = arith.addf %24, %25 : vector<1x128xf32>
    %c0_20 = arith.constant 0 : index
    %c0_21 = arith.constant 0 : index
    %27 = vector.load %arg10[%c0_20, %c0_21] : memref<1x128xf32, #tpu.memory_space<vmem>>, vector<1x128xf32>
    tpu.vector_store %arg10[%c0_20, %c0_21], %26 {strides = array<i32>} : memref<1x128xf32, #tpu.memory_space<vmem>>, vector<1x128xf32>,
    return
  }
  func.func @transform_0(%arg0: i32) -> (i32, i32) {
    %c0_i32 = arith.constant 0 : i32
    %c0_i32_0 = arith.constant 0 : i32
    return %c0_i32, %arg0 : i32, i32
  }
  func.func @transform_1(%arg0: i32) -> (i32, i32) {
    %c0_i32 = arith.constant 0 : i32
    %c0_i32_0 = arith.constant 0 : i32
    %c0_i32_1 = arith.constant 0 : i32
    return %c0_i32, %c0_i32_0 : i32, i32
  }
  func.func @transform_2(%arg0: i32) -> (i32, i32) {
    %c0_i32 = arith.constant 0 : i32
    %c0_i32_0 = arith.constant 0 : i32
    %c0_i32_1 = arith.constant 0 : i32
    return %c0_i32, %c0_i32_0 : i32, i32
  }
  func.func @transform_3(%arg0: i32) -> (i32, i32) {
    %c0_i32 = arith.constant 0 : i32
    %c0_i32_0 = arith.constant 0 : i32
    %c0_i32_1 = arith.constant 0 : i32
    return %c0_i32, %c0_i32_0 : i32, i32
  }
  func.func @transform_4(%arg0: i32) -> (i32, i32) {
    %c0_i32 = arith.constant 0 : i32
    %c0_i32_0 = arith.constant 0 : i32
    %c0_i32_1 = arith.constant 0 : i32
    return %c0_i32, %c0_i32_0 : i32, i32
  }
  func.func @transform_5(%arg0: i32) -> (i32, i32) {
    %c0_i32 = arith.constant 0 : i32
    %c0_i32_0 = arith.constant 0 : i32
    %c0_i32_1 = arith.constant 0 : i32
    return %c0_i32, %c0_i32_0 : i32, i32
  }
  func.func @transform_6(%arg0: i32) -> (i32, i32) {
    %c0_i32 = arith.constant 0 : i32
    %c0_i32_0 = arith.constant 0 : i32
    %c0_i32_1 = arith.constant 0 : i32
    return %c0_i32, %c0_i32_0 : i32, i32
  }
  func.func @transform_7(%arg0: i32) -> (i32, i32) {
    %c0_i32 = arith.constant 0 : i32
    %c0_i32_0 = arith.constant 0 : i32
    %c0_i32_1 = arith.constant 0 : i32
    return %c0_i32, %c0_i32_0 : i32, i32
  }
  func.func @transform_8(%arg0: i32) -> (i32, i32) {
    %c0_i32 = arith.constant 0 : i32
    %c0_i32_0 = arith.constant 0 : i32
    %c0_i32_1 = arith.constant 0 : i32
    return %c0_i32, %c0_i32_0 : i32, i32
  }
  func.func @transform_9(%arg0: i32) -> (i32, i32) {
    %c0_i32 = arith.constant 0 : i32
    %c0_i32_0 = arith.constant 0 : i32
    return %c0_i32, %arg0 : i32, i32
  }
}

</mosaic_0001>

<llo_original>
// kernel: tpu_custom_call.1
$region0: #{tpu_custom_call.1}
  #allocation0 [shape = 'u32[]', space=smem, size = 0x4, offset = 0x4, fixed_abs, tag = 'smem constant byte address 0x4 - core index']
  #allocation1 [shape = 'u32[144,128]{1,0:T(1,128)}', space=vmem, size = 0x12000, scoped, tag = 'internal scratch']
  #allocation2 [shape = 'f32[1,1]{1,0:T(1,128)S(1)}', space=vmem, size = 0x200, scoped, tag = 'scoped memory for tpu_custom_call.1']
  %s0 = inlined_call_operand.vmem [shape: f32[2,256], index: 0, kind: input, shape index: {}]
  %s1 = inlined_call_operand.vmem [shape: f32[32,2], index: 1, kind: input, shape index: {}]
  %s2 = inlined_call_operand.vmem [shape: f32[32,1], index: 2, kind: input, shape index: {}]
  %s3 = inlined_call_operand.vmem [shape: f32[32,32], index: 3, kind: input, shape index: {}]
  %s4 = inlined_call_operand.vmem [shape: f32[32,1], index: 4, kind: input, shape index: {}]
  %s5 = inlined_call_operand.vmem [shape: f32[32,32], index: 5, kind: input, shape index: {}]
  %s6 = inlined_call_operand.vmem [shape: f32[32,1], index: 6, kind: input, shape index: {}]
  %s7 = inlined_call_operand.vmem [shape: f32[32,1], index: 7, kind: input, shape index: {}]
  %s8 = inlined_call_operand.<no memory space> [shape: f32[1,1], index: 8, kind: input, shape index: {}]
  %s9 = inlined_call_operand.hbm [shape: f32[1,256], index: 9, kind: output, shape index: {}]
  %s10 = sld [smem:[#allocation0]]
  $region69: #{tpu_custom_call.1} parent=0
    _
  %s12 = ssub.s32 1, %s10
  %s13 = scalar_select 0, %s12, %s10
  %v14 = vstv %s8
  %15 = vst [vmem:[#allocation2] sm:$0x1] %v14
  $region1: #{tpu_custom_call.1} parent=0
    #allocation3 [shape = 'u8[1024]{0}', space=vmem, size = 0x400, scoped, tag = 'output window, operand 0']
    #allocation4 [shape = 's32[2]{0}', space=sflag, size = 0x8, scoped, tag = 'scoped memory for tpu_custom_call.1']
    %16 = vsyncpa [#allocation4], 0
    %s17 = scalar_lea.sflag [#allocation4], 1
    %18 = vsyncpa %s17, 0
    loop: start=0, step=1, limit=4
    $region2: #{tpu_custom_call.1} parent=1 // loop_pre_header
      _
    $region3: #{tpu_custom_call.1} parent=1 // loop_header
      %s20 = sphi 0, %s24
      %p21 = scmp.ge.s32.totalorder %s20, 4
      %s30 = sphi 0, %s32
      %s33 = sphi 0, %s30
      %s34 = sphi 0, %s33
      %s50 = sphi 0, %s34
      %s54 = sphi 0, %s54
      %s56 = sphi 0, %s54
      %s57 = sphi 0, %s56
      %s71 = sphi 0, %s57
      %s75 = sphi 0, %s75
      %s77 = sphi 0, %s75
      %s78 = sphi 0, %s77
      %s92 = sphi 0, %s78
      %s96 = sphi 0, %s96
      %s98 = sphi 0, %s96
      %s99 = sphi 0, %s98
      %s113 = sphi 0, %s99
      %s117 = sphi 0, %s117
      %s119 = sphi 0, %s117
      %s120 = sphi 0, %s119
      %s134 = sphi 0, %s120
      %s138 = sphi 0, %s138
      %s140 = sphi 0, %s138
      %s141 = sphi 0, %s140
      %s155 = sphi 0, %s141
      %s159 = sphi 0, %s159
      %s161 = sphi 0, %s159
      %s162 = sphi 0, %s161
      %s176 = sphi 0, %s162
      %s180 = sphi 0, %s180
      %s182 = sphi 0, %s180
      %s183 = sphi 0, %s182
      %s197 = sphi 0, %s183
      %s201 = sphi 0, %s201
      %s203 = sphi 0, %s201
      %s204 = sphi 0, %s203
      %s218 = sphi 0, %s204
      %s224 = sphi 0, %s226
      %s227 = sphi 0, %s224
      %s228 = sphi 0, %s227
      %s244 = sphi 0, %s228
    $region4: #{tpu_custom_call.1} parent=1 // loop_header_branch
      %23 = sbr.rel (%p21) target = $region8
    $region5: #{tpu_custom_call.1} parent=1 // loop_body
      %s25 = ssub.s32 %s20, 1
      %s26 = ssub.s32 %s20, 2
      %s27 = sadd.s32 %s20, 1
      %s28 = ssub.s32 %s20, %s27
      %p29 = scmp.eq.s32.totalorder %s28, 0
      %s31 = sadd.s32 %s30, 1
      %s32 = scalar_select %p29, %s30, %s31
      %p35 = pneg %p29
      %p36 = scmp.eq.s32.totalorder %s20, 1
      %p37 = por %p35, %p36
      %p38 = scmp.ne.s32.totalorder %s30, %s33
      %p39 = scmp.eq.s32.totalorder %s20, 0
      %p40 = por %p38, %p39
      %p41 = scmp.ne.s32.totalorder %s30, %s33
      %p42 = scmp.eq.s32.totalorder %s25, 1
      %p43 = por %p41, %p42
      %p44 = scmp.ne.s32.totalorder %s33, %s34
      %p45 = scmp.eq.s32.totalorder %s25, 0
      %p46 = por %p44, %p45
      %p47 = scmp.ne.s32.totalorder %s33, %s34
      %p48 = scmp.eq.s32.totalorder %s26, 1
      %p49 = por %p47, %p48
      %p51 = scmp.ne.s32.totalorder %s34, %s50
      %p52 = scmp.eq.s32.totalorder %s26, 0
      %p53 = por %p51, %p52
      %s55 = sadd.s32 %s54, 1
      %p58 = scmp.eq.s32.totalorder %s20, 1
      %p59 = scmp.ne.s32.totalorder %s54, %s56
      %p60 = scmp.eq.s32.totalorder %s20, 0
      %p61 = por %p59, %p60
      %p62 = scmp.ne.s32.totalorder %s54, %s56
      %p63 = scmp.eq.s32.totalorder %s25, 1
      %p64 = por %p62, %p63
      %p65 = scmp.ne.s32.totalorder %s56, %s57
      %p66 = scmp.eq.s32.totalorder %s25, 0
      %p67 = por %p65, %p66
      %p68 = scmp.ne.s32.totalorder %s56, %s57
      %p69 = scmp.eq.s32.totalorder %s26, 1
      %p70 = por %p68, %p69
      %p72 = scmp.ne.s32.totalorder %s57, %s71
      %p73 = scmp.eq.s32.totalorder %s26, 0
      %p74 = por %p72, %p73
      %s76 = sadd.s32 %s75, 1
      %p79 = scmp.eq.s32.totalorder %s20, 1
      %p80 = scmp.ne.s32.totalorder %s75, %s77
      %p81 = scmp.eq.s32.totalorder %s20, 0
      %p82 = por %p80, %p81
      %p83 = scmp.ne.s32.totalorder %s75, %s77
      %p84 = scmp.eq.s32.totalorder %s25, 1
      %p85 = por %p83, %p84
      %p86 = scmp.ne.s32.totalorder %s77, %s78
      %p87 = scmp.eq.s32.totalorder %s25, 0
      %p88 = por %p86, %p87
      %p89 = scmp.ne.s32.totalorder %s77, %s78
      %p90 = scmp.eq.s32.totalorder %s26, 1
      %p91 = por %p89, %p90
      %p93 = scmp.ne.s32.totalorder %s78, %s92
      %p94 = scmp.eq.s32.totalorder %s26, 0
      %p95 = por %p93, %p94
      %s97 = sadd.s32 %s96, 1
      %p100 = scmp.eq.s32.totalorder %s20, 1
      %p101 = scmp.ne.s32.totalorder %s96, %s98
      %p102 = scmp.eq.s32.totalorder %s20, 0
      %p103 = por %p101, %p102
      %p104 = scmp.ne.s32.totalorder %s96, %s98
      %p105 = scmp.eq.s32.totalorder %s25, 1
      %p106 = por %p104, %p105
      %p107 = scmp.ne.s32.totalorder %s98, %s99
      %p108 = scmp.eq.s32.totalorder %s25, 0
      %p109 = por %p107, %p108
      %p110 = scmp.ne.s32.totalorder %s98, %s99
      %p111 = scmp.eq.s32.totalorder %s26, 1
      %p112 = por %p110, %p111
      %p114 = scmp.ne.s32.totalorder %s99, %s113
      %p115 = scmp.eq.s32.totalorder %s26, 0
      %p116 = por %p114, %p115
      %s118 = sadd.s32 %s117, 1
      %p121 = scmp.eq.s32.totalorder %s20, 1
      %p122 = scmp.ne.s32.totalorder %s117, %s119
      %p123 = scmp.eq.s32.totalorder %s20, 0
      %p124 = por %p122, %p123
      %p125 = scmp.ne.s32.totalorder %s117, %s119
      %p126 = scmp.eq.s32.totalorder %s25, 1
      %p127 = por %p125, %p126
      %p128 = scmp.ne.s32.totalorder %s119, %s120
      %p129 = scmp.eq.s32.totalorder %s25, 0
      %p130 = por %p128, %p129
      %p131 = scmp.ne.s32.totalorder %s119, %s120
      %p132 = scmp.eq.s32.totalorder %s26, 1
      %p133 = por %p131, %p132
      %p135 = scmp.ne.s32.totalorder %s120, %s134
      %p136 = scmp.eq.s32.totalorder %s26, 0
      %p137 = por %p135, %p136
      %s139 = sadd.s32 %s138, 1
      %p142 = scmp.eq.s32.totalorder %s20, 1
      %p143 = scmp.ne.s32.totalorder %s138, %s140
      %p144 = scmp.eq.s32.totalorder %s20, 0
      %p145 = por %p143, %p144
      %p146 = scmp.ne.s32.totalorder %s138, %s140
      %p147 = scmp.eq.s32.totalorder %s25, 1
      %p148 = por %p146, %p147
      %p149 = scmp.ne.s32.totalorder %s140, %s141
      %p150 = scmp.eq.s32.totalorder %s25, 0
      %p151 = por %p149, %p150
      %p152 = scmp.ne.s32.totalorder %s140, %s141
      %p153 = scmp.eq.s32.totalorder %s26, 1
      %p154 = por %p152, %p153
      %p156 = scmp.ne.s32.totalorder %s141, %s155
      %p157 = scmp.eq.s32.totalorder %s26, 0
      %p158 = por %p156, %p157
      %s160 = sadd.s32 %s159, 1
      %p163 = scmp.eq.s32.totalorder %s20, 1
      %p164 = scmp.ne.s32.totalorder %s159, %s161
      %p165 = scmp.eq.s32.totalorder %s20, 0
      %p166 = por %p164, %p165
      %p167 = scmp.ne.s32.totalorder %s159, %s161
      %p168 = scmp.eq.s32.totalorder %s25, 1
      %p169 = por %p167, %p168
      %p170 = scmp.ne.s32.totalorder %s161, %s162
      %p171 = scmp.eq.s32.totalorder %s25, 0
      %p172 = por %p170, %p171
      %p173 = scmp.ne.s32.totalorder %s161, %s162
      %p174 = scmp.eq.s32.totalorder %s26, 1
      %p175 = por %p173, %p174
      %p177 = scmp.ne.s32.totalorder %s162, %s176
      %p178 = scmp.eq.s32.totalorder %s26, 0
      %p179 = por %p177, %p178
      %s181 = sadd.s32 %s180, 1
      %p184 = scmp.eq.s32.totalorder %s20, 1
      %p185 = scmp.ne.s32.totalorder %s180, %s182
      %p186 = scmp.eq.s32.totalorder %s20, 0
      %p187 = por %p185, %p186
      %p188 = scmp.ne.s32.totalorder %s180, %s182
      %p189 = scmp.eq.s32.totalorder %s25, 1
      %p190 = por %p188, %p189
      %p191 = scmp.ne.s32.totalorder %s182, %s183
      %p192 = scmp.eq.s32.totalorder %s25, 0
      %p193 = por %p191, %p192
      %p194 = scmp.ne.s32.totalorder %s182, %s183
      %p195 = scmp.eq.s32.totalorder %s26, 1
      %p196 = por %p194, %p195
      %p198 = scmp.ne.s32.totalorder %s183, %s197
      %p199 = scmp.eq.s32.totalorder %s26, 0
      %p200 = por %p198, %p199
      %s202 = sadd.s32 %s201, 1
      %p205 = scmp.eq.s32.totalorder %s20, 1
      %p206 = scmp.ne.s32.totalorder %s201, %s203
      %p207 = scmp.eq.s32.totalorder %s20, 0
      %p208 = por %p206, %p207
      %p209 = scmp.ne.s32.totalorder %s201, %s203
      %p210 = scmp.eq.s32.totalorder %s25, 1
      %p211 = por %p209, %p210
      %p212 = scmp.ne.s32.totalorder %s203, %s204
      %p213 = scmp.eq.s32.totalorder %s25, 0
      %p214 = por %p212, %p213
      %p215 = scmp.ne.s32.totalorder %s203, %s204
      %p216 = scmp.eq.s32.totalorder %s26, 1
      %p217 = por %p215, %p216
      %p219 = scmp.ne.s32.totalorder %s204, %s218
      %p220 = scmp.eq.s32.totalorder %s26, 0
      %p221 = por %p219, %p220
      %s222 = ssub.s32 %s20, %s27
      %p223 = scmp.eq.s32.totalorder %s222, 0
      %s225 = sadd.s32 %s224, 1
      %s226 = scalar_select %p223, %s224, %s225
      %p229 = pneg %p223
      %p230 = scmp.eq.s32.totalorder %s20, 1
      %p231 = por %p229, %p230
      %p232 = scmp.ne.s32.totalorder %s224, %s227
      %p233 = scmp.eq.s32.totalorder %s20, 0
      %p234 = por %p232, %p233
      %p235 = scmp.ne.s32.totalorder %s224, %s227
      %p236 = scmp.eq.s32.totalorder %s25, 1
      %p237 = por %p235, %p236
      %p238 = scmp.ne.s32.totalorder %s227, %s228
      %p239 = scmp.eq.s32.totalorder %s25, 0
      %p240 = por %p238, %p239
      %p241 = scmp.ne.s32.totalorder %s227, %s228
      %p242 = scmp.eq.s32.totalorder %s26, 1
      %p243 = por %p241, %p242
      %p245 = scmp.ne.s32.totalorder %s228, %s244
      %p246 = scmp.eq.s32.totalorder %s26, 0
      %p247 = por %p245, %p246
      %p248 = scmp.le.s32.totalorder 1, %s20
      %p249 = scmp.lt.s32.totalorder %s20, 3
      %p250 = pnand %p248, %p249
      %p251 = pneg %p250
      // Predicated region
      $region9: #{tpu_custom_call.1} parent=5 // pred_check
        _
      $region10: #{tpu_custom_call.1} parent=5 // pred_check_branch
        %253 = sbr.rel (%p250) target = $region12
      $region11: #{tpu_custom_call.1} parent=5 // pred_region
        %s254 = ssub.s32 %s20, 1
        // Predicated region
        $region13: #{tpu_custom_call.1} parent=11 // pred_check
          %p255 = pneg %p67
        $region14: #{tpu_custom_call.1} parent=11 // pred_check_branch
          %257 = sbr.rel (%p255) target = $region16
        $region15: #{tpu_custom_call.1} parent=11 // pred_region
          _
        $region16: #{tpu_custom_call.1} parent=11 // pred_fallthru
          _
        // Predicated region
        $region17: #{tpu_custom_call.1} parent=11 // pred_check
          %p258 = pneg %p88
        $region18: #{tpu_custom_call.1} parent=11 // pred_check_branch
          %260 = sbr.rel (%p258) target = $region20
        $region19: #{tpu_custom_call.1} parent=11 // pred_region
          _
        $region20: #{tpu_custom_call.1} parent=11 // pred_fallthru
          _
        // Predicated region
        $region21: #{tpu_custom_call.1} parent=11 // pred_check
          %p261 = pneg %p109
        $region22: #{tpu_custom_call.1} parent=11 // pred_check_branch
          %263 = sbr.rel (%p261) target = $region24
        $region23: #{tpu_custom_call.1} parent=11 // pred_region
          _
        $region24: #{tpu_custom_call.1} parent=11 // pred_fallthru
          _
        // Predicated region
        $region25: #{tpu_custom_call.1} parent=11 // pred_check
          %p264 = pneg %p130
        $region26: #{tpu_custom_call.1} parent=11 // pred_check_branch
          %266 = sbr.rel (%p264) target = $region28
        $region27: #{tpu_custom_call.1} parent=11 // pred_region
          _
        $region28: #{tpu_custom_call.1} parent=11 // pred_fallthru
          _
        // Predicated region
        $region29: #{tpu_custom_call.1} parent=11 // pred_check
          %p267 = pneg %p151
        $region30: #{tpu_custom_call.1} parent=11 // pred_check_branch
          %269 = sbr.rel (%p267) target = $region32
        $region31: #{tpu_custom_call.1} parent=11 // pred_region
          _
        $region32: #{tpu_custom_call.1} parent=11 // pred_fallthru
          _
        // Predicated region
        $region33: #{tpu_custom_call.1} parent=11 // pred_check
          %p270 = pneg %p172
        $region34: #{tpu_custom_call.1} parent=11 // pred_check_branch
          %272 = sbr.rel (%p270) target = $region36
        $region35: #{tpu_custom_call.1} parent=11 // pred_region
          _
        $region36: #{tpu_custom_call.1} parent=11 // pred_fallthru
          _
        // Predicated region
        $region37: #{tpu_custom_call.1} parent=11 // pred_check
          %p273 = pneg %p193
        $region38: #{tpu_custom_call.1} parent=11 // pred_check_branch
          %275 = sbr.rel (%p273) target = $region40
        $region39: #{tpu_custom_call.1} parent=11 // pred_region
          _
        $region40: #{tpu_custom_call.1} parent=11 // pred_fallthru
          _
        // Predicated region
        $region41: #{tpu_custom_call.1} parent=11 // pred_check
          %p276 = pneg %p214
        $region42: #{tpu_custom_call.1} parent=11 // pred_check_branch
          %278 = sbr.rel (%p276) target = $region44
        $region43: #{tpu_custom_call.1} parent=11 // pred_region
          _
        $region44: #{tpu_custom_call.1} parent=11 // pred_fallthru
          _
      $region12: #{tpu_custom_call.1} parent=5 // pred_fallthru
        _
      %p279 = scmp.lt.s32.totalorder %s20, 2
      // Predicated region
      $region45: #{tpu_custom_call.1} parent=5 // pred_check
        %p280 = pneg %p279
      $region46: #{tpu_custom_call.1} parent=5 // pred_check_branch
        %282 = sbr.rel (%p280) target = $region48
      $region47: #{tpu_custom_call.1} parent=5 // pred_region
        // Predicated region
        $region49: #{tpu_custom_call.1} parent=47 // pred_check
          %p283 = pneg %p40
        $region50: #{tpu_custom_call.1} parent=47 // pred_check_branch
          %285 = sbr.rel (%p283) target = $region52
        $region51: #{tpu_custom_call.1} parent=47 // pred_region
          %p286 = scmp.lt.s32.totalorder %s20, 1
          %s287 = scalar_select %p286, %s20, 1
          %s288 = smul.addr %s287, 2
          %s289 = scalar_lea.vmem %s0, %s288
        $region52: #{tpu_custom_call.1} parent=47 // pred_fallthru
          _
      $region48: #{tpu_custom_call.1} parent=5 // pred_fallthru
        _
      %p290 = scmp.le.s32.totalorder 1, %s20
      %p291 = scmp.lt.s32.totalorder %s20, 3
      %p292 = pnand %p290, %p291
      %p293 = pneg %p292
      // Predicated region
      $region53: #{tpu_custom_call.1} parent=5 // pred_check
        _
      $region54: #{tpu_custom_call.1} parent=5 // pred_check_branch
        %295 = sbr.rel (%p292) target = $region56
      $region55: #{tpu_custom_call.1} parent=5 // pred_region
        %s296 = ssub.s32 %s20, 1
        %p297 = scmp.lt.s32.totalorder %s25, 1
        %s298 = scalar_select %p297, %s25, 1
        %s299 = smul.addr %s298, 2
        %s300 = scalar_lea.vmem %s0, %s299
        %p301 = pneg %p46
        %p302 = pneg %p43
        %p303 = pneg %p67
        %p304 = pneg %p64
        %p305 = pneg %p88
        %p306 = pneg %p85
        %p307 = pneg %p109
        %p308 = pneg %p106
        %p309 = pneg %p130
        %p310 = pneg %p127
        %p311 = pneg %p151
        %p312 = pneg %p148
        %p313 = pneg %p172
        %p314 = pneg %p169
        %p315 = pneg %p193
        %p316 = pneg %p190
        %p317 = pneg %p214
        %p318 = pneg %p211
        %p319 = pneg %p240
        %p320 = pneg %p237
        %s321 = sand.u32 %s227, 1
        %s322 = scalar_lea.sflag [#allocation4], %s321
        %s323 = sand.u32 %s227, 1
        %s324 = scalar_lea.vmem [#allocation3], %s323
        %p325 = scmp.lt.s32.totalorder %s25, 1
        %s326 = scalar_select %p325, %s25, 1
        %s327 = smul.addr %s326, 2
        %s328 = scalar_lea.vmem %s0, %s327
        %v329 = vld [vmem:[%s328] sm:$0x3]
        %v330 = vld [vmem:[%s1] sm:$0xff]
        %v331 = vld [vmem:[%s1 + $0x8] sm:$0xff]
        %v332 = vld [vmem:[%s1 + $0x10] sm:$0xff]
        %v333 = vld [vmem:[%s1 + $0x18] sm:$0xff]
        %v334 = vld [vmem:[%s2] sm:$0xff]
        %v335 = vld [vmem:[%s2 + $0x8] sm:$0xff]
        %v336 = vld [vmem:[%s2 + $0x10] sm:$0xff]
        %v337 = vld [vmem:[%s2 + $0x18] sm:$0xff]
        %339 = vset.pattern.permute.xlu0 0
        %340 = vperm.xlu0 %339, %v334
        %v341 = vpop.permute.xlu0 %340
        %344 = vset.pattern.permute.xlu0 0
        %345 = vperm.xlu0 %344, %v335
        %v346 = vpop.permute.xlu0 %345
        %349 = vset.pattern.permute.xlu0 0
        %350 = vperm.xlu0 %349, %v336
        %v351 = vpop.permute.xlu0 %350
        %354 = vset.pattern.permute.xlu0 0
        %355 = vperm.xlu0 %354, %v337
        %v356 = vpop.permute.xlu0 %355
        %vm358 = vcmask 15360
        %v360 = vsel %vm358, %v330, 0
        %v363 = vsel %vm358, %v331, 0
        %v366 = vsel %vm358, %v332, 0
        %v369 = vsel %vm358, %v333, 0
        %vm371 = vcmask 1041408
        %v373 = vsel %vm371, %v329, 0
        %375 = vmatprep.subr.mxu0 0.0
        %376 = vmatpush1.msra.mxu0 0.0
        %377 = vmatprep.subr.mxu0 0.0
        %378 = vmatpush1.msra.mxu0 0.0
        %379 = vmatprep.subr.mxu0 0.0
        %380 = vmatpush1.msra.mxu0 0.0
        %381 = vmatprep.subr.mxu0 0.0
        %382 = vmatpush1.msra.mxu0 0.0
        %383 = vmatprep.subr.mxu0 0.0
        %384 = vmatpush1.msra.mxu0 0.0
        %385 = vmatprep.subr.mxu0 0.0
        %386 = vmatpush1.msra.mxu0 0.0
        %387 = vmatprep.subr.mxu0 0.0
        %388 = vmatpush1.msra.mxu0 0.0
        %389 = vmatprep.subr.mxu0 0.0
        %390 = vmatpush1.msra.mxu0 0.0
        %391 = vmatprep.subr.mxu0 0.0
        %392 = vmatpush1.msra.mxu0 0.0
        %393 = vmatprep.subr.mxu0 0.0
        %394 = vmatpush1.msra.mxu0 0.0
        %395 = vmatprep.subr.mxu0 0.0
        %396 = vmatpush1.msra.mxu0 0.0
        %397 = vmatprep.subr.mxu0 0.0
        %398 = vmatpush1.msra.mxu0 0.0
        %399 = vmatprep.subr.mxu0 0.0
        %400 = vmatpush1.msra.mxu0 0.0
        %401 = vmatprep.subr.mxu0 0.0
        %402 = vmatpush1.msra.mxu0 0.0
        %403 = vmatprep.subr.mxu0 0.0
        %404 = vmatpush1.msra.mxu0 0.0
        %405 = vmatprep.subr.mxu0 0.0
        %406 = vmatpush1.msra.mxu0 %v373
        %407 = vmatprep.subr.mxu0 0.0
        %408 = vmatpush2.msra.mxu0 0.0
        %409 = vmatprep.subr.mxu0 0.0
        %410 = vmatpush2.msra.mxu0 0.0
        %411 = vmatprep.subr.mxu0 0.0
        %412 = vmatpush2.msra.mxu0 0.0
        %413 = vmatprep.subr.mxu0 0.0
        %414 = vmatpush2.msra.mxu0 0.0
        %415 = vmatprep.subr.mxu0 0.0
        %416 = vmatpush2.msra.mxu0 0.0
        %417 = vmatprep.subr.mxu0 0.0
        %418 = vmatpush2.msra.mxu0 0.0
        %419 = vmatprep.subr.mxu0 0.0
        %420 = vmatpush2.msra.mxu0 0.0
        %421 = vmatprep.subr.mxu0 0.0
        %422 = vmatpush2.msra.mxu0 0.0
        %423 = vmatprep.subr.mxu0 0.0
        %424 = vmatpush2.msra.mxu0 0.0
        %425 = vmatprep.subr.mxu0 0.0
        %426 = vmatpush2.msra.mxu0 0.0
        %427 = vmatprep.subr.mxu0 0.0
        %428 = vmatpush2.msra.mxu0 0.0
        %429 = vmatprep.subr.mxu0 0.0
        %430 = vmatpush2.msra.mxu0 0.0
        %431 = vmatprep.subr.mxu0 0.0
        %432 = vmatpush2.msra.mxu0 0.0
        %433 = vmatprep.subr.mxu0 0.0
        %434 = vmatpush2.msra.mxu0 0.0
        %435 = vmatprep.subr.mxu0 0.0
        %436 = vmatpush2.msra.mxu0 0.0
        %437 = vmatprep.subr.mxu0 0.0
        %438 = vmatpush2.msra.mxu0 0.0
        %439 = vmatprep.mubr.f32.mxu0 0.0
        %440 = vmatmul.mubr.f32.gmra.mxu0 %v360
        %v441 = vpop.f32.mrf.mxu0
        %v442 = vadd.f32 %v341, %v441
        %v443 = vpop.f32.mrf.mxu0
        %444 = vmatprep.mubr.f32.mxu0 0.0
        %445 = vmatmul.mubr.f32.gmra.mxu0 %v363
        %v446 = vpop.f32.mrf.mxu0
        %v447 = vadd.f32 %v346, %v446
        %v448 = vpop.f32.mrf.mxu0
        %449 = vmatprep.mubr.f32.mxu0 0.0
        %450 = vmatmul.mubr.f32.gmra.mxu0 %v366
        %v451 = vpop.f32.mrf.mxu0
        %v452 = vadd.f32 %v351, %v451
        %v453 = vpop.f32.mrf.mxu0
        %454 = vmatprep.mubr.f32.mxu0 0.0
        %455 = vmatmul.mubr.f32.gmra.mxu0 %v369
        %v456 = vpop.f32.mrf.mxu0
        %v457 = vadd.f32 %v356, %v456
        %v458 = vpop.f32.mrf.mxu0
        %459 = vdwg.mxu0
        %v460 = vand.u32 2147483647, %v442
        %vm461 = vcmp.le.f32.partialorder %v460, 0.7853982
        %vm462 = vcmp.lt.s32.totalorder %v442, 0
        %v463 = vand.u32 %v442, 2139095040
        %v464 = vshrl.u32 %v463, 23
        %v465 = vsub.s32 %v464, 127
        %v466 = vand.u32 2147483647, %v442
        %v467 = vand.u32 %v466, 8388607
        %v468 = vor.u32 %v467, 8388608
        %v469 = vsub.s32 0, %v468
        %v470 = vadd.s32 %v465, 1
        %vm471 = vcmp.gt.s32.totalorder %v470, 0
        %v472 = vsel %vm471, %v470, 0
        %v473 = vshrl.u32 %v472, 5
        %v474 = vand.u32 %v472, 31
        %v475 = vsub.s32 32, %v474
        %v476 = vshrl.u32 683565275, %v475
        %v477 = vshll.u32 683565275, %v474
        %v478 = vshrl.u32 2475754826, %v475
        %v479 = vor.u32 %v477, %v478
        %v480 = vshll.u32 2475754826, %v474
        %v481 = vshrl.u32 2131351028, %v475
        %v482 = vor.u32 %v480, %v481
        %v483 = vshll.u32 2131351028, %v474
        %v484 = vshrl.u32 2102212464, %v475
        %v485 = vor.u32 %v483, %v484
        %v486 = vshll.u32 2102212464, %v474
        %v487 = vshrl.u32 920167782, %v475
        %v488 = vor.u32 %v486, %v487
        %v489 = vshll.u32 920167782, %v474
        %v490 = vshrl.u32 1326507024, %v475
        %v491 = vor.u32 %v489, %v490
        %vm492 = vcmp.lt.s32.totalorder %v473, 1
        %vm493 = vcmp.lt.s32.totalorder %v473, 2
        %vm494 = vcmp.lt.s32.totalorder %v473, 3
        %vm495 = vcmp.lt.s32.totalorder %v473, 4
        %v496 = vsel %vm492, %v476, %v479
        %v497 = vsel %vm495, %v485, 2102212464
        %v498 = vsel %vm494, %v482, %v497
        %v499 = vsel %vm493, %v496, %v498
        %v500 = vsel %vm492, %v479, %v482
        %v501 = vsel %vm495, %v488, 920167782
        %v502 = vsel %vm494, %v485, %v501
        %v503 = vsel %vm493, %v500, %v502
        %v504 = vsel %vm492, %v482, %v485
        %v505 = vsel %vm495, %v491, 1326507024
        %v506 = vsel %vm494, %v488, %v505
        %v507 = vsel %vm493, %v504, %v506
        %v508 = vshll.u32 %v468, 8
        %v509 = vmul.u32.u64.compose %v508, %v507
        %v510 = vextract.low.u32 %v509
        %v511 = vextract.high.u32 %v509
        %v512 = vmul.u32.u64.compose %v508, %v503
        %v513 = vextract.low.u32 %v512
        %v514 = vextract.high.u32 %v512
        %v515 = vmul.u32 %v508, %v499
        %v516 = vadd.s32 %v511, %v513
        %vm517 = vc.u32 %v511, %v513
        %v518 = vadd.s32 %v514, 1
        %v519 = vsel %vm517, %v518, %v514
        %v520 = vadd.s32 %v515, %v519
        %v521 = vadd.s32 %v520, 536870912
        %v522 = vshrl.u32 %v521, 30
        %v523 = vshll.u32 %v522, 30
        %v524 = vsub.s32 %v520, %v523
        %vm525 = vcmp.lt.s32.totalorder %v524, 0
        %v526 = vsub.s32 0, %v524
        %v527 = vsel %vm525, %v526, %v524
        %v528 = vclz %v527
        %v529 = vsub.s32 %v528, 2
        %vm530 = vcmp.gt.s32.totalorder 0, %v529
        %v531 = vsel %vm530, 0, %v529
        %v532 = vsub.s32 32, %v531
        %v533 = vshll.u32 %v524, %v531
        %v534 = vshrl.u32 %v516, %v532
        %v535 = vor.u32 %v533, %v534
        %v536 = vsub.s32 4294967266, %v531
        %v537 = vadd.s32 %v536, 127
        %v538 = vshll.u32 %v537, 23
        %v539 = vor.u32 4788187, %v538
        %v540 = vand.u32 2147483647, %v539
        %v542 = vcvt.s32.f32 %v535
        %v543 = vmul.f32 %v542, %v540
        %v544 = vxor.u32 %v543, 2147483648
        %v545 = vsel %vm462, %v544, %v543
        %v546 = vsub.s32 4, %v522
        %v547 = vsel %vm462, %v546, %v522
        %v548 = vsel %vm461, %v442, %v545
        %v549 = vsel %vm461, 0, %v547
        %v550 = vcosq.f32.pop %v548
        %v551 = vsinq.f32.pop %v548
        %vm552 = vweird.f32 %v442
        %v553 = vadd.s32 %v549, 3
        %v554 = vand.u32 %v553, 3
        %vm555 = vcmp.lt.s32.totalorder %v554, 2
        %vm556 = vcmp.eq.s32.totalorder %v554, 0
        %v557 = vxor.u32 %v551, 2147483648
        %v558 = vsel %vm556, %v550, %v557
        %vm559 = vcmp.eq.s32.totalorder %v554, 2
        %v560 = vxor.u32 %v550, 2147483648
        %v561 = vsel %vm559, %v560, %v551
        %v562 = vsel %vm555, %v558, %v561
        %v563 = vsel %vm552, nan, %v562
        %v564 = vand.u32 2147483647, %v447
        %vm565 = vcmp.le.f32.partialorder %v564, 0.7853982
        %vm566 = vcmp.lt.s32.totalorder %v447, 0
        %v567 = vand.u32 %v447, 2139095040
        %v568 = vshrl.u32 %v567, 23
        %v569 = vsub.s32 %v568, 127
        %v570 = vand.u32 2147483647, %v447
        %v571 = vand.u32 %v570, 8388607
        %v572 = vor.u32 %v571, 8388608
        %v573 = vsub.s32 0, %v572
        %v574 = vadd.s32 %v569, 1
        %vm575 = vcmp.gt.s32.totalorder %v574, 0
        %v576 = vsel %vm575, %v574, 0
        %v577 = vshrl.u32 %v576, 5
        %v578 = vand.u32 %v576, 31
        %v579 = vsub.s32 32, %v578
        %v580 = vshrl.u32 683565275, %v579
        %v581 = vshll.u32 683565275, %v578
        %v582 = vshrl.u32 2475754826, %v579
        %v583 = vor.u32 %v581, %v582
        %v584 = vshll.u32 2475754826, %v578
        %v585 = vshrl.u32 2131351028, %v579
        %v586 = vor.u32 %v584, %v585
        %v587 = vshll.u32 2131351028, %v578
        %v588 = vshrl.u32 2102212464, %v579
        %v589 = vor.u32 %v587, %v588
        %v590 = vshll.u32 2102212464, %v578
        %v591 = vshrl.u32 920167782, %v579
        %v592 = vor.u32 %v590, %v591
        %v593 = vshll.u32 920167782, %v578
        %v594 = vshrl.u32 1326507024, %v579
        %v595 = vor.u32 %v593, %v594
        %vm596 = vcmp.lt.s32.totalorder %v577, 1
        %vm597 = vcmp.lt.s32.totalorder %v577, 2
        %vm598 = vcmp.lt.s32.totalorder %v577, 3
        %vm599 = vcmp.lt.s32.totalorder %v577, 4
        %v600 = vsel %vm596, %v580, %v583
        %v601 = vsel %vm599, %v589, 2102212464
        %v602 = vsel %vm598, %v586, %v601
        %v603 = vsel %vm597, %v600, %v602
        %v604 = vsel %vm596, %v583, %v586
        %v605 = vsel %vm599, %v592, 920167782
        %v606 = vsel %vm598, %v589, %v605
        %v607 = vsel %vm597, %v604, %v606
        %v608 = vsel %vm596, %v586, %v589
        %v609 = vsel %vm599, %v595, 1326507024
        %v610 = vsel %vm598, %v592, %v609
        %v611 = vsel %vm597, %v608, %v610
        %v612 = vshll.u32 %v572, 8
        %v613 = vmul.u32.u64.compose %v612, %v611
        %v614 = vextract.low.u32 %v613
        %v615 = vextract.high.u32 %v613
        %v616 = vmul.u32.u64.compose %v612, %v607
        %v617 = vextract.low.u32 %v616
        %v618 = vextract.high.u32 %v616
        %v619 = vmul.u32 %v612, %v603
        %v620 = vadd.s32 %v615, %v617
        %vm621 = vc.u32 %v615, %v617
        %v622 = vadd.s32 %v618, 1
        %v623 = vsel %vm621, %v622, %v618
        %v624 = vadd.s32 %v619, %v623
        %v625 = vadd.s32 %v624, 536870912
        %v626 = vshrl.u32 %v625, 30
        %v627 = vshll.u32 %v626, 30
        %v628 = vsub.s32 %v624, %v627
        %vm629 = vcmp.lt.s32.totalorder %v628, 0
        %v630 = vsub.s32 0, %v628
        %v631 = vsel %vm629, %v630, %v628
        %v632 = vclz %v631
        %v633 = vsub.s32 %v632, 2
        %vm634 = vcmp.gt.s32.totalorder 0, %v633
        %v635 = vsel %vm634, 0, %v633
        %v636 = vsub.s32 32, %v635
        %v637 = vshll.u32 %v628, %v635
        %v638 = vshrl.u32 %v620, %v636
        %v639 = vor.u32 %v637, %v638
        %v640 = vsub.s32 4294967266, %v635
        %v641 = vadd.s32 %v640, 127
        %v642 = vshll.u32 %v641, 23
        %v643 = vor.u32 4788187, %v642
        %v644 = vand.u32 2147483647, %v643
        %v646 = vcvt.s32.f32 %v639
        %v647 = vmul.f32 %v646, %v644
        %v648 = vxor.u32 %v647, 2147483648
        %v649 = vsel %vm566, %v648, %v647
        %v650 = vsub.s32 4, %v626
        %v651 = vsel %vm566, %v650, %v626
        %v652 = vsel %vm565, %v447, %v649
        %v653 = vsel %vm565, 0, %v651
        %v654 = vcosq.f32.pop %v652
        %v655 = vsinq.f32.pop %v652
        %vm656 = vweird.f32 %v447
        %v657 = vadd.s32 %v653, 3
        %v658 = vand.u32 %v657, 3
        %vm659 = vcmp.lt.s32.totalorder %v658, 2
        %vm660 = vcmp.eq.s32.totalorder %v658, 0
        %v661 = vxor.u32 %v655, 2147483648
        %v662 = vsel %vm660, %v654, %v661
        %vm663 = vcmp.eq.s32.totalorder %v658, 2
        %v664 = vxor.u32 %v654, 2147483648
        %v665 = vsel %vm663, %v664, %v655
        %v666 = vsel %vm659, %v662, %v665
        %v667 = vsel %vm656, nan, %v666
        %v668 = vand.u32 2147483647, %v452
        %vm669 = vcmp.le.f32.partialorder %v668, 0.7853982
        %vm670 = vcmp.lt.s32.totalorder %v452, 0
        %v671 = vand.u32 %v452, 2139095040
        %v672 = vshrl.u32 %v671, 23
        %v673 = vsub.s32 %v672, 127
        %v674 = vand.u32 2147483647, %v452
        %v675 = vand.u32 %v674, 8388607
        %v676 = vor.u32 %v675, 8388608
        %v677 = vsub.s32 0, %v676
        %v678 = vadd.s32 %v673, 1
        %vm679 = vcmp.gt.s32.totalorder %v678, 0
        %v680 = vsel %vm679, %v678, 0
        %v681 = vshrl.u32 %v680, 5
        %v682 = vand.u32 %v680, 31
        %v683 = vsub.s32 32, %v682
        %v684 = vshrl.u32 683565275, %v683
        %v685 = vshll.u32 683565275, %v682
        %v686 = vshrl.u32 2475754826, %v683
        %v687 = vor.u32 %v685, %v686
        %v688 = vshll.u32 2475754826, %v682
        %v689 = vshrl.u32 2131351028, %v683
        %v690 = vor.u32 %v688, %v689
        %v691 = vshll.u32 2131351028, %v682
        %v692 = vshrl.u32 2102212464, %v683
        %v693 = vor.u32 %v691, %v692
        %v694 = vshll.u32 2102212464, %v682
        %v695 = vshrl.u32 920167782, %v683
        %v696 = vor.u32 %v694, %v695
        %v697 = vshll.u32 920167782, %v682
        %v698 = vshrl.u32 1326507024, %v683
        %v699 = vor.u32 %v697, %v698
        %vm700 = vcmp.lt.s32.totalorder %v681, 1
        %vm701 = vcmp.lt.s32.totalorder %v681, 2
        %vm702 = vcmp.lt.s32.totalorder %v681, 3
        %vm703 = vcmp.lt.s32.totalorder %v681, 4
        %v704 = vsel %vm700, %v684, %v687
        %v705 = vsel %vm703, %v693, 2102212464
        %v706 = vsel %vm702, %v690, %v705
        %v707 = vsel %vm701, %v704, %v706
        %v708 = vsel %vm700, %v687, %v690
        %v709 = vsel %vm703, %v696, 920167782
        %v710 = vsel %vm702, %v693, %v709
        %v711 = vsel %vm701, %v708, %v710
        %v712 = vsel %vm700, %v690, %v693
        %v713 = vsel %vm703, %v699, 1326507024
        %v714 = vsel %vm702, %v696, %v713
        %v715 = vsel %vm701, %v712, %v714
        %v716 = vshll.u32 %v676, 8
        %v717 = vmul.u32.u64.compose %v716, %v715
        %v718 = vextract.low.u32 %v717
        %v719 = vextract.high.u32 %v717
        %v720 = vmul.u32.u64.compose %v716, %v711
        %v721 = vextract.low.u32 %v720
        %v722 = vextract.high.u32 %v720
        %v723 = vmul.u32 %v716, %v707
        %v724 = vadd.s32 %v719, %v721
        %vm725 = vc.u32 %v719, %v721
        %v726 = vadd.s32 %v722, 1
        %v727 = vsel %vm725, %v726, %v722
        %v728 = vadd.s32 %v723, %v727
        %v729 = vadd.s32 %v728, 536870912
        %v730 = vshrl.u32 %v729, 30
        %v731 = vshll.u32 %v730, 30
        %v732 = vsub.s32 %v728, %v731
        %vm733 = vcmp.lt.s32.totalorder %v732, 0
        %v734 = vsub.s32 0, %v732
        %v735 = vsel %vm733, %v734, %v732
        %v736 = vclz %v735
        %v737 = vsub.s32 %v736, 2
        %vm738 = vcmp.gt.s32.totalorder 0, %v737
        %v739 = vsel %vm738, 0, %v737
        %v740 = vsub.s32 32, %v739
        %v741 = vshll.u32 %v732, %v739
        %v742 = vshrl.u32 %v724, %v740
        %v743 = vor.u32 %v741, %v742
        %v744 = vsub.s32 4294967266, %v739
        %v745 = vadd.s32 %v744, 127
        %v746 = vshll.u32 %v745, 23
        %v747 = vor.u32 4788187, %v746
        %v748 = vand.u32 2147483647, %v747
        %v750 = vcvt.s32.f32 %v743
        %v751 = vmul.f32 %v750, %v748
        %v752 = vxor.u32 %v751, 2147483648
        %v753 = vsel %vm670, %v752, %v751
        %v754 = vsub.s32 4, %v730
        %v755 = vsel %vm670, %v754, %v730
        %v756 = vsel %vm669, %v452, %v753
        %v757 = vsel %vm669, 0, %v755
        %v758 = vcosq.f32.pop %v756
        %v759 = vsinq.f32.pop %v756
        %vm760 = vweird.f32 %v452
        %v761 = vadd.s32 %v757, 3
        %v762 = vand.u32 %v761, 3
        %vm763 = vcmp.lt.s32.totalorder %v762, 2
        %vm764 = vcmp.eq.s32.totalorder %v762, 0
        %v765 = vxor.u32 %v759, 2147483648
        %v766 = vsel %vm764, %v758, %v765
        %vm767 = vcmp.eq.s32.totalorder %v762, 2
        %v768 = vxor.u32 %v758, 2147483648
        %v769 = vsel %vm767, %v768, %v759
        %v770 = vsel %vm763, %v766, %v769
        %v771 = vsel %vm760, nan, %v770
        %v772 = vand.u32 2147483647, %v457
        %vm773 = vcmp.le.f32.partialorder %v772, 0.7853982
        %vm774 = vcmp.lt.s32.totalorder %v457, 0
        %v775 = vand.u32 %v457, 2139095040
        %v776 = vshrl.u32 %v775, 23
        %v777 = vsub.s32 %v776, 127
        %v778 = vand.u32 2147483647, %v457
        %v779 = vand.u32 %v778, 8388607
        %v780 = vor.u32 %v779, 8388608
        %v781 = vsub.s32 0, %v780
        %v782 = vadd.s32 %v777, 1
        %vm783 = vcmp.gt.s32.totalorder %v782, 0
        %v784 = vsel %vm783, %v782, 0
        %v785 = vshrl.u32 %v784, 5
        %v786 = vand.u32 %v784, 31
        %v787 = vsub.s32 32, %v786
        %v788 = vshrl.u32 683565275, %v787
        %v789 = vshll.u32 683565275, %v786
        %v790 = vshrl.u32 2475754826, %v787
        %v791 = vor.u32 %v789, %v790
        %v792 = vshll.u32 2475754826, %v786
        %v793 = vshrl.u32 2131351028, %v787
        %v794 = vor.u32 %v792, %v793
        %v795 = vshll.u32 2131351028, %v786
        %v796 = vshrl.u32 2102212464, %v787
        %v797 = vor.u32 %v795, %v796
        %v798 = vshll.u32 2102212464, %v786
        %v799 = vshrl.u32 920167782, %v787
        %v800 = vor.u32 %v798, %v799
        %v801 = vshll.u32 920167782, %v786
        %v802 = vshrl.u32 1326507024, %v787
        %v803 = vor.u32 %v801, %v802
        %vm804 = vcmp.lt.s32.totalorder %v785, 1
        %vm805 = vcmp.lt.s32.totalorder %v785, 2
        %vm806 = vcmp.lt.s32.totalorder %v785, 3
        %vm807 = vcmp.lt.s32.totalorder %v785, 4
        %v808 = vsel %vm804, %v788, %v791
        %v809 = vsel %vm807, %v797, 2102212464
        %v810 = vsel %vm806, %v794, %v809
        %v811 = vsel %vm805, %v808, %v810
        %v812 = vsel %vm804, %v791, %v794
        %v813 = vsel %vm807, %v800, 920167782
        %v814 = vsel %vm806, %v797, %v813
        %v815 = vsel %vm805, %v812, %v814
        %v816 = vsel %vm804, %v794, %v797
        %v817 = vsel %vm807, %v803, 1326507024
        %v818 = vsel %vm806, %v800, %v817
        %v819 = vsel %vm805, %v816, %v818
        %v820 = vshll.u32 %v780, 8
        %v821 = vmul.u32.u64.compose %v820, %v819
        %v822 = vextract.low.u32 %v821
        %v823 = vextract.high.u32 %v821
        %v824 = vmul.u32.u64.compose %v820, %v815
        %v825 = vextract.low.u32 %v824
        %v826 = vextract.high.u32 %v824
        %v827 = vmul.u32 %v820, %v811
        %v828 = vadd.s32 %v823, %v825
        %vm829 = vc.u32 %v823, %v825
        %v830 = vadd.s32 %v826, 1
        %v831 = vsel %vm829, %v830, %v826
        %v832 = vadd.s32 %v827, %v831
        %v833 = vadd.s32 %v832, 536870912
        %v834 = vshrl.u32 %v833, 30
        %v835 = vshll.u32 %v834, 30
        %v836 = vsub.s32 %v832, %v835
        %vm837 = vcmp.lt.s32.totalorder %v836, 0
        %v838 = vsub.s32 0, %v836
        %v839 = vsel %vm837, %v838, %v836
        %v840 = vclz %v839
        %v841 = vsub.s32 %v840, 2
        %vm842 = vcmp.gt.s32.totalorder 0, %v841
        %v843 = vsel %vm842, 0, %v841
        %v844 = vsub.s32 32, %v843
        %v845 = vshll.u32 %v836, %v843
        %v846 = vshrl.u32 %v828, %v844
        %v847 = vor.u32 %v845, %v846
        %v848 = vsub.s32 4294967266, %v843
        %v849 = vadd.s32 %v848, 127
        %v850 = vshll.u32 %v849, 23
        %v851 = vor.u32 4788187, %v850
        %v852 = vand.u32 2147483647, %v851
        %v854 = vcvt.s32.f32 %v847
        %v855 = vmul.f32 %v854, %v852
        %v856 = vxor.u32 %v855, 2147483648
        %v857 = vsel %vm774, %v856, %v855
        %v858 = vsub.s32 4, %v834
        %v859 = vsel %vm774, %v858, %v834
        %v860 = vsel %vm773, %v457, %v857
        %v861 = vsel %vm773, 0, %v859
        %v862 = vcosq.f32.pop %v860
        %v863 = vsinq.f32.pop %v860
        %vm864 = vweird.f32 %v457
        %v865 = vadd.s32 %v861, 3
        %v866 = vand.u32 %v865, 3
        %vm867 = vcmp.lt.s32.totalorder %v866, 2
        %vm868 = vcmp.eq.s32.totalorder %v866, 0
        %v869 = vxor.u32 %v863, 2147483648
        %v870 = vsel %vm868, %v862, %v869
        %vm871 = vcmp.eq.s32.totalorder %v866, 2
        %v872 = vxor.u32 %v862, 2147483648
        %v873 = vsel %vm871, %v872, %v863
        %v874 = vsel %vm867, %v870, %v873
        %v875 = vsel %vm864, nan, %v874
        %v876 = vld [vmem:[%s3] sm:$0xff]
        %v877 = vld [vmem:[%s3 + $0x8] sm:$0xff]
        %v878 = vld [vmem:[%s3 + $0x10] sm:$0xff]
        %v879 = vld [vmem:[%s3 + $0x18] sm:$0xff]
        %v880 = vld [vmem:[%s4] sm:$0xff]
        %v881 = vld [vmem:[%s4 + $0x8] sm:$0xff]
        %v882 = vld [vmem:[%s4 + $0x10] sm:$0xff]
        %v883 = vld [vmem:[%s4 + $0x18] sm:$0xff]
        %885 = vset.pattern.permute.xlu0 0
        %886 = vperm.xlu0 %885, %v880
        %v887 = vpop.permute.xlu0 %886
        %890 = vset.pattern.permute.xlu0 0
        %891 = vperm.xlu0 %890, %v881
        %v892 = vpop.permute.xlu0 %891
        %895 = vset.pattern.permute.xlu0 0
        %896 = vperm.xlu0 %895, %v882
        %v897 = vpop.permute.xlu0 %896
        %900 = vset.pattern.permute.xlu0 0
        %901 = vperm.xlu0 %900, %v883
        %v902 = vpop.permute.xlu0 %901
        %vm904 = vcmask 261120
        %v906 = vsel %vm904, %v876, 0
        %v909 = vsel %vm904, %v877, 0
        %v912 = vsel %vm904, %v878, 0
        %v915 = vsel %vm904, %v879, 0
        %917 = vmatprep.subr.mxu0 0.0
        %918 = vmatpush1.msra.mxu0 0.0
        %919 = vmatprep.subr.mxu0 0.0
        %920 = vmatpush1.msra.mxu0 0.0
        %921 = vmatprep.subr.mxu0 0.0
        %922 = vmatpush1.msra.mxu0 0.0
        %923 = vmatprep.subr.mxu0 0.0
        %924 = vmatpush1.msra.mxu0 0.0
        %925 = vmatprep.subr.mxu0 0.0
        %926 = vmatpush1.msra.mxu0 0.0
        %927 = vmatprep.subr.mxu0 0.0
        %928 = vmatpush1.msra.mxu0 0.0
        %929 = vmatprep.subr.mxu0 0.0
        %930 = vmatpush1.msra.mxu0 0.0
        %931 = vmatprep.subr.mxu0 0.0
        %932 = vmatpush1.msra.mxu0 0.0
        %933 = vmatprep.subr.mxu0 0.0
        %934 = vmatpush1.msra.mxu0 0.0
        %935 = vmatprep.subr.mxu0 0.0
        %936 = vmatpush1.msra.mxu0 0.0
        %937 = vmatprep.subr.mxu0 0.0
        %938 = vmatpush1.msra.mxu0 0.0
        %939 = vmatprep.subr.mxu0 0.0
        %940 = vmatpush1.msra.mxu0 0.0
        %941 = vmatprep.subr.mxu0 0.0
        %942 = vmatpush1.msra.mxu0 %v875
        %943 = vmatprep.subr.mxu0 0.0
        %944 = vmatpush1.msra.mxu0 %v771
        %945 = vmatprep.subr.mxu0 0.0
        %946 = vmatpush1.msra.mxu0 %v667
        %947 = vmatprep.subr.mxu0 0.0
        %948 = vmatpush1.msra.mxu0 %v563
        %949 = vmatprep.subr.mxu0 0.0
        %950 = vmatpush2.msra.mxu0 0.0
        %951 = vmatprep.subr.mxu0 0.0
        %952 = vmatpush2.msra.mxu0 0.0
        %953 = vmatprep.subr.mxu0 0.0
        %954 = vmatpush2.msra.mxu0 0.0
        %955 = vmatprep.subr.mxu0 0.0
        %956 = vmatpush2.msra.mxu0 0.0
        %957 = vmatprep.subr.mxu0 0.0
        %958 = vmatpush2.msra.mxu0 0.0
        %959 = vmatprep.subr.mxu0 0.0
        %960 = vmatpush2.msra.mxu0 0.0
        %961 = vmatprep.subr.mxu0 0.0
        %962 = vmatpush2.msra.mxu0 0.0
        %963 = vmatprep.subr.mxu0 0.0
        %964 = vmatpush2.msra.mxu0 0.0
        %965 = vmatprep.subr.mxu0 0.0
        %966 = vmatpush2.msra.mxu0 0.0
        %967 = vmatprep.subr.mxu0 0.0
        %968 = vmatpush2.msra.mxu0 0.0
        %969 = vmatprep.subr.mxu0 0.0
        %970 = vmatpush2.msra.mxu0 0.0
        %971 = vmatprep.subr.mxu0 0.0
        %972 = vmatpush2.msra.mxu0 0.0
        %973 = vmatprep.subr.mxu0 0.0
        %974 = vmatpush2.msra.mxu0 0.0
        %975 = vmatprep.subr.mxu0 0.0
        %976 = vmatpush2.msra.mxu0 0.0
        %977 = vmatprep.subr.mxu0 0.0
        %978 = vmatpush2.msra.mxu0 0.0
        %979 = vmatprep.subr.mxu0 0.0
        %980 = vmatpush2.msra.mxu0 0.0
        %981 = vmatprep.mubr.f32.mxu0 0.0
        %982 = vmatmul.mubr.f32.gmra.mxu0 %v906
        %v983 = vpop.f32.mrf.mxu0
        %v984 = vadd.f32 %v887, %v983
        %v985 = vpop.f32.mrf.mxu0
        %986 = vmatprep.mubr.f32.mxu0 0.0
        %987 = vmatmul.mubr.f32.gmra.mxu0 %v909
        %v988 = vpop.f32.mrf.mxu0
        %v989 = vadd.f32 %v892, %v988
        %v990 = vpop.f32.mrf.mxu0
        %991 = vmatprep.mubr.f32.mxu0 0.0
        %992 = vmatmul.mubr.f32.gmra.mxu0 %v912
        %v993 = vpop.f32.mrf.mxu0
        %v994 = vadd.f32 %v897, %v993
        %v995 = vpop.f32.mrf.mxu0
        %996 = vmatprep.mubr.f32.mxu0 0.0
        %997 = vmatmul.mubr.f32.gmra.mxu0 %v915
        %v998 = vpop.f32.mrf.mxu0
        %v999 = vadd.f32 %v902, %v998
        %v1000 = vpop.f32.mrf.mxu0
        %1001 = vdwg.mxu0
        %v1002 = vand.u32 2147483647, %v984
        %vm1003 = vcmp.le.f32.partialorder %v1002, 0.7853982
        %vm1004 = vcmp.lt.s32.totalorder %v984, 0
        %v1005 = vand.u32 %v984, 2139095040
        %v1006 = vshrl.u32 %v1005, 23
        %v1007 = vsub.s32 %v1006, 127
        %v1008 = vand.u32 2147483647, %v984
        %v1009 = vand.u32 %v1008, 8388607
        %v1010 = vor.u32 %v1009, 8388608
        %v1011 = vsub.s32 0, %v1010
        %v1012 = vadd.s32 %v1007, 1
        %vm1013 = vcmp.gt.s32.totalorder %v1012, 0
        %v1014 = vsel %vm1013, %v1012, 0
        %v1015 = vshrl.u32 %v1014, 5
        %v1016 = vand.u32 %v1014, 31
        %v1017 = vsub.s32 32, %v1016
        %v1018 = vshrl.u32 683565275, %v1017
        %v1019 = vshll.u32 683565275, %v1016
        %v1020 = vshrl.u32 2475754826, %v1017
        %v1021 = vor.u32 %v1019, %v1020
        %v1022 = vshll.u32 2475754826, %v1016
        %v1023 = vshrl.u32 2131351028, %v1017
        %v1024 = vor.u32 %v1022, %v1023
        %v1025 = vshll.u32 2131351028, %v1016
        %v1026 = vshrl.u32 2102212464, %v1017
        %v1027 = vor.u32 %v1025, %v1026
        %v1028 = vshll.u32 2102212464, %v1016
        %v1029 = vshrl.u32 920167782, %v1017
        %v1030 = vor.u32 %v1028, %v1029
        %v1031 = vshll.u32 920167782, %v1016
        %v1032 = vshrl.u32 1326507024, %v1017
        %v1033 = vor.u32 %v1031, %v1032
        %vm1034 = vcmp.lt.s32.totalorder %v1015, 1
        %vm1035 = vcmp.lt.s32.totalorder %v1015, 2
        %vm1036 = vcmp.lt.s32.totalorder %v1015, 3
        %vm1037 = vcmp.lt.s32.totalorder %v1015, 4
        %v1038 = vsel %vm1034, %v1018, %v1021
        %v1039 = vsel %vm1037, %v1027, 2102212464
        %v1040 = vsel %vm1036, %v1024, %v1039
        %v1041 = vsel %vm1035, %v1038, %v1040
        %v1042 = vsel %vm1034, %v1021, %v1024
        %v1043 = vsel %vm1037, %v1030, 920167782
        %v1044 = vsel %vm1036, %v1027, %v1043
        %v1045 = vsel %vm1035, %v1042, %v1044
        %v1046 = vsel %vm1034, %v1024, %v1027
        %v1047 = vsel %vm1037, %v1033, 1326507024
        %v1048 = vsel %vm1036, %v1030, %v1047
        %v1049 = vsel %vm1035, %v1046, %v1048
        %v1050 = vshll.u32 %v1010, 8
        %v1051 = vmul.u32.u64.compose %v1050, %v1049
        %v1052 = vextract.low.u32 %v1051
        %v1053 = vextract.high.u32 %v1051
        %v1054 = vmul.u32.u64.compose %v1050, %v1045
        %v1055 = vextract.low.u32 %v1054
        %v1056 = vextract.high.u32 %v1054
        %v1057 = vmul.u32 %v1050, %v1041
        %v1058 = vadd.s32 %v1053, %v1055
        %vm1059 = vc.u32 %v1053, %v1055
        %v1060 = vadd.s32 %v1056, 1
        %v1061 = vsel %vm1059, %v1060, %v1056
        %v1062 = vadd.s32 %v1057, %v1061
        %v1063 = vadd.s32 %v1062, 536870912
        %v1064 = vshrl.u32 %v1063, 30
        %v1065 = vshll.u32 %v1064, 30
        %v1066 = vsub.s32 %v1062, %v1065
        %vm1067 = vcmp.lt.s32.totalorder %v1066, 0
        %v1068 = vsub.s32 0, %v1066
        %v1069 = vsel %vm1067, %v1068, %v1066
        %v1070 = vclz %v1069
        %v1071 = vsub.s32 %v1070, 2
        %vm1072 = vcmp.gt.s32.totalorder 0, %v1071
        %v1073 = vsel %vm1072, 0, %v1071
        %v1074 = vsub.s32 32, %v1073
        %v1075 = vshll.u32 %v1066, %v1073
        %v1076 = vshrl.u32 %v1058, %v1074
        %v1077 = vor.u32 %v1075, %v1076
        %v1078 = vsub.s32 4294967266, %v1073
        %v1079 = vadd.s32 %v1078, 127
        %v1080 = vshll.u32 %v1079, 23
        %v1081 = vor.u32 4788187, %v1080
        %v1082 = vand.u32 2147483647, %v1081
        %v1084 = vcvt.s32.f32 %v1077
        %v1085 = vmul.f32 %v1084, %v1082
        %v1086 = vxor.u32 %v1085, 2147483648
        %v1087 = vsel %vm1004, %v1086, %v1085
        %v1088 = vsub.s32 4, %v1064
        %v1089 = vsel %vm1004, %v1088, %v1064
        %v1090 = vsel %vm1003, %v984, %v1087
        %v1091 = vsel %vm1003, 0, %v1089
        %v1092 = vcosq.f32.pop %v1090
        %v1093 = vsinq.f32.pop %v1090
        %vm1094 = vweird.f32 %v984
        %v1095 = vadd.s32 %v1091, 3
        %v1096 = vand.u32 %v1095, 3
        %vm1097 = vcmp.lt.s32.totalorder %v1096, 2
        %vm1098 = vcmp.eq.s32.totalorder %v1096, 0
        %v1099 = vxor.u32 %v1093, 2147483648
        %v1100 = vsel %vm1098, %v1092, %v1099
        %vm1101 = vcmp.eq.s32.totalorder %v1096, 2
        %v1102 = vxor.u32 %v1092, 2147483648
        %v1103 = vsel %vm1101, %v1102, %v1093
        %v1104 = vsel %vm1097, %v1100, %v1103
        %v1105 = vsel %vm1094, nan, %v1104
        %v1106 = vand.u32 2147483647, %v989
        %vm1107 = vcmp.le.f32.partialorder %v1106, 0.7853982
        %vm1108 = vcmp.lt.s32.totalorder %v989, 0
        %v1109 = vand.u32 %v989, 2139095040
        %v1110 = vshrl.u32 %v1109, 23
        %v1111 = vsub.s32 %v1110, 127
        %v1112 = vand.u32 2147483647, %v989
        %v1113 = vand.u32 %v1112, 8388607
        %v1114 = vor.u32 %v1113, 8388608
        %v1115 = vsub.s32 0, %v1114
        %v1116 = vadd.s32 %v1111, 1
        %vm1117 = vcmp.gt.s32.totalorder %v1116, 0
        %v1118 = vsel %vm1117, %v1116, 0
        %v1119 = vshrl.u32 %v1118, 5
        %v1120 = vand.u32 %v1118, 31
        %v1121 = vsub.s32 32, %v1120
        %v1122 = vshrl.u32 683565275, %v1121
        %v1123 = vshll.u32 683565275, %v1120
        %v1124 = vshrl.u32 2475754826, %v1121
        %v1125 = vor.u32 %v1123, %v1124
        %v1126 = vshll.u32 2475754826, %v1120
        %v1127 = vshrl.u32 2131351028, %v1121
        %v1128 = vor.u32 %v1126, %v1127
        %v1129 = vshll.u32 2131351028, %v1120
        %v1130 = vshrl.u32 2102212464, %v1121
        %v1131 = vor.u32 %v1129, %v1130
        %v1132 = vshll.u32 2102212464, %v1120
        %v1133 = vshrl.u32 920167782, %v1121
        %v1134 = vor.u32 %v1132, %v1133
        %v1135 = vshll.u32 920167782, %v1120
        %v1136 = vshrl.u32 1326507024, %v1121
        %v1137 = vor.u32 %v1135, %v1136
        %vm1138 = vcmp.lt.s32.totalorder %v1119, 1
        %vm1139 = vcmp.lt.s32.totalorder %v1119, 2
        %vm1140 = vcmp.lt.s32.totalorder %v1119, 3
        %vm1141 = vcmp.lt.s32.totalorder %v1119, 4
        %v1142 = vsel %vm1138, %v1122, %v1125
        %v1143 = vsel %vm1141, %v1131, 2102212464
        %v1144 = vsel %vm1140, %v1128, %v1143
        %v1145 = vsel %vm1139, %v1142, %v1144
        %v1146 = vsel %vm1138, %v1125, %v1128
        %v1147 = vsel %vm1141, %v1134, 920167782
        %v1148 = vsel %vm1140, %v1131, %v1147
        %v1149 = vsel %vm1139, %v1146, %v1148
        %v1150 = vsel %vm1138, %v1128, %v1131
        %v1151 = vsel %vm1141, %v1137, 1326507024
        %v1152 = vsel %vm1140, %v1134, %v1151
        %v1153 = vsel %vm1139, %v1150, %v1152
        %v1154 = vshll.u32 %v1114, 8
        %v1155 = vmul.u32.u64.compose %v1154, %v1153
        %v1156 = vextract.low.u32 %v1155
        %v1157 = vextract.high.u32 %v1155
        %v1158 = vmul.u32.u64.compose %v1154, %v1149
        %v1159 = vextract.low.u32 %v1158
        %v1160 = vextract.high.u32 %v1158
        %v1161 = vmul.u32 %v1154, %v1145
        %v1162 = vadd.s32 %v1157, %v1159
        %vm1163 = vc.u32 %v1157, %v1159
        %v1164 = vadd.s32 %v1160, 1
        %v1165 = vsel %vm1163, %v1164, %v1160
        %v1166 = vadd.s32 %v1161, %v1165
        %v1167 = vadd.s32 %v1166, 536870912
        %v1168 = vshrl.u32 %v1167, 30
        %v1169 = vshll.u32 %v1168, 30
        %v1170 = vsub.s32 %v1166, %v1169
        %vm1171 = vcmp.lt.s32.totalorder %v1170, 0
        %v1172 = vsub.s32 0, %v1170
        %v1173 = vsel %vm1171, %v1172, %v1170
        %v1174 = vclz %v1173
        %v1175 = vsub.s32 %v1174, 2
        %vm1176 = vcmp.gt.s32.totalorder 0, %v1175
        %v1177 = vsel %vm1176, 0, %v1175
        %v1178 = vsub.s32 32, %v1177
        %v1179 = vshll.u32 %v1170, %v1177
        %v1180 = vshrl.u32 %v1162, %v1178
        %v1181 = vor.u32 %v1179, %v1180
        %v1182 = vsub.s32 4294967266, %v1177
        %v1183 = vadd.s32 %v1182, 127
        %v1184 = vshll.u32 %v1183, 23
        %v1185 = vor.u32 4788187, %v1184
        %v1186 = vand.u32 2147483647, %v1185
        %v1188 = vcvt.s32.f32 %v1181
        %v1189 = vmul.f32 %v1188, %v1186
        %v1190 = vxor.u32 %v1189, 2147483648
        %v1191 = vsel %vm1108, %v1190, %v1189
        %v1192 = vsub.s32 4, %v1168
        %v1193 = vsel %vm1108, %v1192, %v1168
        %v1194 = vsel %vm1107, %v989, %v1191
        %v1195 = vsel %vm1107, 0, %v1193
        %v1196 = vcosq.f32.pop %v1194
        %v1197 = vsinq.f32.pop %v1194
        %vm1198 = vweird.f32 %v989
        %v1199 = vadd.s32 %v1195, 3
        %v1200 = vand.u32 %v1199, 3
        %vm1201 = vcmp.lt.s32.totalorder %v1200, 2
        %vm1202 = vcmp.eq.s32.totalorder %v1200, 0
        %v1203 = vxor.u32 %v1197, 2147483648
        %v1204 = vsel %vm1202, %v1196, %v1203
        %vm1205 = vcmp.eq.s32.totalorder %v1200, 2
        %v1206 = vxor.u32 %v1196, 2147483648
        %v1207 = vsel %vm1205, %v1206, %v1197
        %v1208 = vsel %vm1201, %v1204, %v1207
        %v1209 = vsel %vm1198, nan, %v1208
        %v1210 = vand.u32 2147483647, %v994
        %vm1211 = vcmp.le.f32.partialorder %v1210, 0.7853982
        %vm1212 = vcmp.lt.s32.totalorder %v994, 0
        %v1213 = vand.u32 %v994, 2139095040
        %v1214 = vshrl.u32 %v1213, 23
        %v1215 = vsub.s32 %v1214, 127
        %v1216 = vand.u32 2147483647, %v994
        %v1217 = vand.u32 %v1216, 8388607
        %v1218 = vor.u32 %v1217, 8388608
        %v1219 = vsub.s32 0, %v1218
        %v1220 = vadd.s32 %v1215, 1
        %vm1221 = vcmp.gt.s32.totalorder %v1220, 0
        %v1222 = vsel %vm1221, %v1220, 0
        %v1223 = vshrl.u32 %v1222, 5
        %v1224 = vand.u32 %v1222, 31
        %v1225 = vsub.s32 32, %v1224
        %v1226 = vshrl.u32 683565275, %v1225
        %v1227 = vshll.u32 683565275, %v1224
        %v1228 = vshrl.u32 2475754826, %v1225
        %v1229 = vor.u32 %v1227, %v1228
        %v1230 = vshll.u32 2475754826, %v1224
        %v1231 = vshrl.u32 2131351028, %v1225
        %v1232 = vor.u32 %v1230, %v1231
        %v1233 = vshll.u32 2131351028, %v1224
        %v1234 = vshrl.u32 2102212464, %v1225
        %v1235 = vor.u32 %v1233, %v1234
        %v1236 = vshll.u32 2102212464, %v1224
        %v1237 = vshrl.u32 920167782, %v1225
        %v1238 = vor.u32 %v1236, %v1237
        %v1239 = vshll.u32 920167782, %v1224
        %v1240 = vshrl.u32 1326507024, %v1225
        %v1241 = vor.u32 %v1239, %v1240
        %vm1242 = vcmp.lt.s32.totalorder %v1223, 1
        %vm1243 = vcmp.lt.s32.totalorder %v1223, 2
        %vm1244 = vcmp.lt.s32.totalorder %v1223, 3
        %vm1245 = vcmp.lt.s32.totalorder %v1223, 4
        %v1246 = vsel %vm1242, %v1226, %v1229
        %v1247 = vsel %vm1245, %v1235, 2102212464
        %v1248 = vsel %vm1244, %v1232, %v1247
        %v1249 = vsel %vm1243, %v1246, %v1248
        %v1250 = vsel %vm1242, %v1229, %v1232
        %v1251 = vsel %vm1245, %v1238, 920167782
        %v1252 = vsel %vm1244, %v1235, %v1251
        %v1253 = vsel %vm1243, %v1250, %v1252
        %v1254 = vsel %vm1242, %v1232, %v1235
        %v1255 = vsel %vm1245, %v1241, 1326507024
        %v1256 = vsel %vm1244, %v1238, %v1255
        %v1257 = vsel %vm1243, %v1254, %v1256
        %v1258 = vshll.u32 %v1218, 8
        %v1259 = vmul.u32.u64.compose %v1258, %v1257
        %v1260 = vextract.low.u32 %v1259
        %v1261 = vextract.high.u32 %v1259
        %v1262 = vmul.u32.u64.compose %v1258, %v1253
        %v1263 = vextract.low.u32 %v1262
        %v1264 = vextract.high.u32 %v1262
        %v1265 = vmul.u32 %v1258, %v1249
        %v1266 = vadd.s32 %v1261, %v1263
        %vm1267 = vc.u32 %v1261, %v1263
        %v1268 = vadd.s32 %v1264, 1
        %v1269 = vsel %vm1267, %v1268, %v1264
        %v1270 = vadd.s32 %v1265, %v1269
        %v1271 = vadd.s32 %v1270, 536870912
        %v1272 = vshrl.u32 %v1271, 30
        %v1273 = vshll.u32 %v1272, 30
        %v1274 = vsub.s32 %v1270, %v1273
        %vm1275 = vcmp.lt.s32.totalorder %v1274, 0
        %v1276 = vsub.s32 0, %v1274
        %v1277 = vsel %vm1275, %v1276, %v1274
        %v1278 = vclz %v1277
        %v1279 = vsub.s32 %v1278, 2
        %vm1280 = vcmp.gt.s32.totalorder 0, %v1279
        %v1281 = vsel %vm1280, 0, %v1279
        %v1282 = vsub.s32 32, %v1281
        %v1283 = vshll.u32 %v1274, %v1281
        %v1284 = vshrl.u32 %v1266, %v1282
        %v1285 = vor.u32 %v1283, %v1284
        %v1286 = vsub.s32 4294967266, %v1281
        %v1287 = vadd.s32 %v1286, 127
        %v1288 = vshll.u32 %v1287, 23
        %v1289 = vor.u32 4788187, %v1288
        %v1290 = vand.u32 2147483647, %v1289
        %v1292 = vcvt.s32.f32 %v1285
        %v1293 = vmul.f32 %v1292, %v1290
        %v1294 = vxor.u32 %v1293, 2147483648
        %v1295 = vsel %vm1212, %v1294, %v1293
        %v1296 = vsub.s32 4, %v1272
        %v1297 = vsel %vm1212, %v1296, %v1272
        %v1298 = vsel %vm1211, %v994, %v1295
        %v1299 = vsel %vm1211, 0, %v1297
        %v1300 = vcosq.f32.pop %v1298
        %v1301 = vsinq.f32.pop %v1298
        %vm1302 = vweird.f32 %v994
        %v1303 = vadd.s32 %v1299, 3
        %v1304 = vand.u32 %v1303, 3
        %vm1305 = vcmp.lt.s32.totalorder %v1304, 2
        %vm1306 = vcmp.eq.s32.totalorder %v1304, 0
        %v1307 = vxor.u32 %v1301, 2147483648
        %v1308 = vsel %vm1306, %v1300, %v1307
        %vm1309 = vcmp.eq.s32.totalorder %v1304, 2
        %v1310 = vxor.u32 %v1300, 2147483648
        %v1311 = vsel %vm1309, %v1310, %v1301
        %v1312 = vsel %vm1305, %v1308, %v1311
        %v1313 = vsel %vm1302, nan, %v1312
        %v1314 = vand.u32 2147483647, %v999
        %vm1315 = vcmp.le.f32.partialorder %v1314, 0.7853982
        %vm1316 = vcmp.lt.s32.totalorder %v999, 0
        %v1317 = vand.u32 %v999, 2139095040
        %v1318 = vshrl.u32 %v1317, 23
        %v1319 = vsub.s32 %v1318, 127
        %v1320 = vand.u32 2147483647, %v999
        %v1321 = vand.u32 %v1320, 8388607
        %v1322 = vor.u32 %v1321, 8388608
        %v1323 = vsub.s32 0, %v1322
        %v1324 = vadd.s32 %v1319, 1
        %vm1325 = vcmp.gt.s32.totalorder %v1324, 0
        %v1326 = vsel %vm1325, %v1324, 0
        %v1327 = vshrl.u32 %v1326, 5
        %v1328 = vand.u32 %v1326, 31
        %v1329 = vsub.s32 32, %v1328
        %v1330 = vshrl.u32 683565275, %v1329
        %v1331 = vshll.u32 683565275, %v1328
        %v1332 = vshrl.u32 2475754826, %v1329
        %v1333 = vor.u32 %v1331, %v1332
        %v1334 = vshll.u32 2475754826, %v1328
        %v1335 = vshrl.u32 2131351028, %v1329
        %v1336 = vor.u32 %v1334, %v1335
        %v1337 = vshll.u32 2131351028, %v1328
        %v1338 = vshrl.u32 2102212464, %v1329
        %v1339 = vor.u32 %v1337, %v1338
        %v1340 = vshll.u32 2102212464, %v1328
        %v1341 = vshrl.u32 920167782, %v1329
        %v1342 = vor.u32 %v1340, %v1341
        %v1343 = vshll.u32 920167782, %v1328
        %v1344 = vshrl.u32 1326507024, %v1329
        %v1345 = vor.u32 %v1343, %v1344
        %vm1346 = vcmp.lt.s32.totalorder %v1327, 1
        %vm1347 = vcmp.lt.s32.totalorder %v1327, 2
        %vm1348 = vcmp.lt.s32.totalorder %v1327, 3
        %vm1349 = vcmp.lt.s32.totalorder %v1327, 4
        %v1350 = vsel %vm1346, %v1330, %v1333
        %v1351 = vsel %vm1349, %v1339, 2102212464
        %v1352 = vsel %vm1348, %v1336, %v1351
        %v1353 = vsel %vm1347, %v1350, %v1352
        %v1354 = vsel %vm1346, %v1333, %v1336
        %v1355 = vsel %vm1349, %v1342, 920167782
        %v1356 = vsel %vm1348, %v1339, %v1355
        %v1357 = vsel %vm1347, %v1354, %v1356
        %v1358 = vsel %vm1346, %v1336, %v1339
        %v1359 = vsel %vm1349, %v1345, 1326507024
        %v1360 = vsel %vm1348, %v1342, %v1359
        %v1361 = vsel %vm1347, %v1358, %v1360
        %v1362 = vshll.u32 %v1322, 8
        %v1363 = vmul.u32.u64.compose %v1362, %v1361
        %v1364 = vextract.low.u32 %v1363
        %v1365 = vextract.high.u32 %v1363
        %v1366 = vmul.u32.u64.compose %v1362, %v1357
        %v1367 = vextract.low.u32 %v1366
        %v1368 = vextract.high.u32 %v1366
        %v1369 = vmul.u32 %v1362, %v1353
        %v1370 = vadd.s32 %v1365, %v1367
        %vm1371 = vc.u32 %v1365, %v1367
        %v1372 = vadd.s32 %v1368, 1
        %v1373 = vsel %vm1371, %v1372, %v1368
        %v1374 = vadd.s32 %v1369, %v1373
        %v1375 = vadd.s32 %v1374, 536870912
        %v1376 = vshrl.u32 %v1375, 30
        %v1377 = vshll.u32 %v1376, 30
        %v1378 = vsub.s32 %v1374, %v1377
        %vm1379 = vcmp.lt.s32.totalorder %v1378, 0
        %v1380 = vsub.s32 0, %v1378
        %v1381 = vsel %vm1379, %v1380, %v1378
        %v1382 = vclz %v1381
        %v1383 = vsub.s32 %v1382, 2
        %vm1384 = vcmp.gt.s32.totalorder 0, %v1383
        %v1385 = vsel %vm1384, 0, %v1383
        %v1386 = vsub.s32 32, %v1385
        %v1387 = vshll.u32 %v1378, %v1385
        %v1388 = vshrl.u32 %v1370, %v1386
        %v1389 = vor.u32 %v1387, %v1388
        %v1390 = vsub.s32 4294967266, %v1385
        %v1391 = vadd.s32 %v1390, 127
        %v1392 = vshll.u32 %v1391, 23
        %v1393 = vor.u32 4788187, %v1392
        %v1394 = vand.u32 2147483647, %v1393
        %v1396 = vcvt.s32.f32 %v1389
        %v1397 = vmul.f32 %v1396, %v1394
        %v1398 = vxor.u32 %v1397, 2147483648
        %v1399 = vsel %vm1316, %v1398, %v1397
        %v1400 = vsub.s32 4, %v1376
        %v1401 = vsel %vm1316, %v1400, %v1376
        %v1402 = vsel %vm1315, %v999, %v1399
        %v1403 = vsel %vm1315, 0, %v1401
        %v1404 = vcosq.f32.pop %v1402
        %v1405 = vsinq.f32.pop %v1402
        %vm1406 = vweird.f32 %v999
        %v1407 = vadd.s32 %v1403, 3
        %v1408 = vand.u32 %v1407, 3
        %vm1409 = vcmp.lt.s32.totalorder %v1408, 2
        %vm1410 = vcmp.eq.s32.totalorder %v1408, 0
        %v1411 = vxor.u32 %v1405, 2147483648
        %v1412 = vsel %vm1410, %v1404, %v1411
        %vm1413 = vcmp.eq.s32.totalorder %v1408, 2
        %v1414 = vxor.u32 %v1404, 2147483648
        %v1415 = vsel %vm1413, %v1414, %v1405
        %v1416 = vsel %vm1409, %v1412, %v1415
        %v1417 = vsel %vm1406, nan, %v1416
        %v1418 = vld [vmem:[%s5] sm:$0xff]
        %v1419 = vld [vmem:[%s5 + $0x8] sm:$0xff]
        %v1420 = vld [vmem:[%s5 + $0x10] sm:$0xff]
        %v1421 = vld [vmem:[%s5 + $0x18] sm:$0xff]
        %v1422 = vld [vmem:[%s6] sm:$0xff]
        %v1423 = vld [vmem:[%s6 + $0x8] sm:$0xff]
        %v1424 = vld [vmem:[%s6 + $0x10] sm:$0xff]
        %v1425 = vld [vmem:[%s6 + $0x18] sm:$0xff]
        %1427 = vset.pattern.permute.xlu0 0
        %1428 = vperm.xlu0 %1427, %v1422
        %v1429 = vpop.permute.xlu0 %1428
        %1432 = vset.pattern.permute.xlu0 0
        %1433 = vperm.xlu0 %1432, %v1423
        %v1434 = vpop.permute.xlu0 %1433
        %1437 = vset.pattern.permute.xlu0 0
        %1438 = vperm.xlu0 %1437, %v1424
        %v1439 = vpop.permute.xlu0 %1438
        %1442 = vset.pattern.permute.xlu0 0
        %1443 = vperm.xlu0 %1442, %v1425
        %v1444 = vpop.permute.xlu0 %1443
        %v1447 = vsel %vm904, %v1418, 0
        %v1450 = vsel %vm904, %v1419, 0
        %v1453 = vsel %vm904, %v1420, 0
        %v1456 = vsel %vm904, %v1421, 0
        %1458 = vmatprep.subr.mxu0 0.0
        %1459 = vmatpush1.msra.mxu0 0.0
        %1460 = vmatprep.subr.mxu0 0.0
        %1461 = vmatpush1.msra.mxu0 0.0
        %1462 = vmatprep.subr.mxu0 0.0
        %1463 = vmatpush1.msra.mxu0 0.0
        %1464 = vmatprep.subr.mxu0 0.0
        %1465 = vmatpush1.msra.mxu0 0.0
        %1466 = vmatprep.subr.mxu0 0.0
        %1467 = vmatpush1.msra.mxu0 0.0
        %1468 = vmatprep.subr.mxu0 0.0
        %1469 = vmatpush1.msra.mxu0 0.0
        %1470 = vmatprep.subr.mxu0 0.0
        %1471 = vmatpush1.msra.mxu0 0.0
        %1472 = vmatprep.subr.mxu0 0.0
        %1473 = vmatpush1.msra.mxu0 0.0
        %1474 = vmatprep.subr.mxu0 0.0
        %1475 = vmatpush1.msra.mxu0 0.0
        %1476 = vmatprep.subr.mxu0 0.0
        %1477 = vmatpush1.msra.mxu0 0.0
        %1478 = vmatprep.subr.mxu0 0.0
        %1479 = vmatpush1.msra.mxu0 0.0
        %1480 = vmatprep.subr.mxu0 0.0
        %1481 = vmatpush1.msra.mxu0 0.0
        %1482 = vmatprep.subr.mxu0 0.0
        %1483 = vmatpush1.msra.mxu0 %v1417
        %1484 = vmatprep.subr.mxu0 0.0
        %1485 = vmatpush1.msra.mxu0 %v1313
        %1486 = vmatprep.subr.mxu0 0.0
        %1487 = vmatpush1.msra.mxu0 %v1209
        %1488 = vmatprep.subr.mxu0 0.0
        %1489 = vmatpush1.msra.mxu0 %v1105
        %1490 = vmatprep.subr.mxu0 0.0
        %1491 = vmatpush2.msra.mxu0 0.0
        %1492 = vmatprep.subr.mxu0 0.0
        %1493 = vmatpush2.msra.mxu0 0.0
        %1494 = vmatprep.subr.mxu0 0.0
        %1495 = vmatpush2.msra.mxu0 0.0
        %1496 = vmatprep.subr.mxu0 0.0
        %1497 = vmatpush2.msra.mxu0 0.0
        %1498 = vmatprep.subr.mxu0 0.0
        %1499 = vmatpush2.msra.mxu0 0.0
        %1500 = vmatprep.subr.mxu0 0.0
        %1501 = vmatpush2.msra.mxu0 0.0
        %1502 = vmatprep.subr.mxu0 0.0
        %1503 = vmatpush2.msra.mxu0 0.0
        %1504 = vmatprep.subr.mxu0 0.0
        %1505 = vmatpush2.msra.mxu0 0.0
        %1506 = vmatprep.subr.mxu0 0.0
        %1507 = vmatpush2.msra.mxu0 0.0
        %1508 = vmatprep.subr.mxu0 0.0
        %1509 = vmatpush2.msra.mxu0 0.0
        %1510 = vmatprep.subr.mxu0 0.0
        %1511 = vmatpush2.msra.mxu0 0.0
        %1512 = vmatprep.subr.mxu0 0.0
        %1513 = vmatpush2.msra.mxu0 0.0
        %1514 = vmatprep.subr.mxu0 0.0
        %1515 = vmatpush2.msra.mxu0 0.0
        %1516 = vmatprep.subr.mxu0 0.0
        %1517 = vmatpush2.msra.mxu0 0.0
        %1518 = vmatprep.subr.mxu0 0.0
        %1519 = vmatpush2.msra.mxu0 0.0
        %1520 = vmatprep.subr.mxu0 0.0
        %1521 = vmatpush2.msra.mxu0 0.0
        %1522 = vmatprep.mubr.f32.mxu0 0.0
        %1523 = vmatmul.mubr.f32.gmra.mxu0 %v1447
        %v1524 = vpop.f32.mrf.mxu0
        %v1525 = vadd.f32 %v1429, %v1524
        %v1526 = vpop.f32.mrf.mxu0
        %1527 = vmatprep.mubr.f32.mxu0 0.0
        %1528 = vmatmul.mubr.f32.gmra.mxu0 %v1450
        %v1529 = vpop.f32.mrf.mxu0
        %v1530 = vadd.f32 %v1434, %v1529
        %v1531 = vpop.f32.mrf.mxu0
        %1532 = vmatprep.mubr.f32.mxu0 0.0
        %1533 = vmatmul.mubr.f32.gmra.mxu0 %v1453
        %v1534 = vpop.f32.mrf.mxu0
        %v1535 = vadd.f32 %v1439, %v1534
        %v1536 = vpop.f32.mrf.mxu0
        %1537 = vmatprep.mubr.f32.mxu0 0.0
        %1538 = vmatmul.mubr.f32.gmra.mxu0 %v1456
        %v1539 = vpop.f32.mrf.mxu0
        %v1540 = vadd.f32 %v1444, %v1539
        %v1541 = vpop.f32.mrf.mxu0
        %1542 = vdwg.mxu0
        %v1543 = vand.u32 2147483647, %v1525
        %vm1544 = vcmp.le.f32.partialorder %v1543, 0.7853982
        %vm1545 = vcmp.lt.s32.totalorder %v1525, 0
        %v1546 = vand.u32 %v1525, 2139095040
        %v1547 = vshrl.u32 %v1546, 23
        %v1548 = vsub.s32 %v1547, 127
        %v1549 = vand.u32 2147483647, %v1525
        %v1550 = vand.u32 %v1549, 8388607
        %v1551 = vor.u32 %v1550, 8388608
        %v1552 = vsub.s32 0, %v1551
        %v1553 = vadd.s32 %v1548, 1
        %vm1554 = vcmp.gt.s32.totalorder %v1553, 0
        %v1555 = vsel %vm1554, %v1553, 0
        %v1556 = vshrl.u32 %v1555, 5
        %v1557 = vand.u32 %v1555, 31
        %v1558 = vsub.s32 32, %v1557
        %v1559 = vshrl.u32 683565275, %v1558
        %v1560 = vshll.u32 683565275, %v1557
        %v1561 = vshrl.u32 2475754826, %v1558
        %v1562 = vor.u32 %v1560, %v1561
        %v1563 = vshll.u32 2475754826, %v1557
        %v1564 = vshrl.u32 2131351028, %v1558
        %v1565 = vor.u32 %v1563, %v1564
        %v1566 = vshll.u32 2131351028, %v1557
        %v1567 = vshrl.u32 2102212464, %v1558
        %v1568 = vor.u32 %v1566, %v1567
        %v1569 = vshll.u32 2102212464, %v1557
        %v1570 = vshrl.u32 920167782, %v1558
        %v1571 = vor.u32 %v1569, %v1570
        %v1572 = vshll.u32 920167782, %v1557
        %v1573 = vshrl.u32 1326507024, %v1558
        %v1574 = vor.u32 %v1572, %v1573
        %vm1575 = vcmp.lt.s32.totalorder %v1556, 1
        %vm1576 = vcmp.lt.s32.totalorder %v1556, 2
        %vm1577 = vcmp.lt.s32.totalorder %v1556, 3
        %vm1578 = vcmp.lt.s32.totalorder %v1556, 4
        %v1579 = vsel %vm1575, %v1559, %v1562
        %v1580 = vsel %vm1578, %v1568, 2102212464
        %v1581 = vsel %vm1577, %v1565, %v1580
        %v1582 = vsel %vm1576, %v1579, %v1581
        %v1583 = vsel %vm1575, %v1562, %v1565
        %v1584 = vsel %vm1578, %v1571, 920167782
        %v1585 = vsel %vm1577, %v1568, %v1584
        %v1586 = vsel %vm1576, %v1583, %v1585
        %v1587 = vsel %vm1575, %v1565, %v1568
        %v1588 = vsel %vm1578, %v1574, 1326507024
        %v1589 = vsel %vm1577, %v1571, %v1588
        %v1590 = vsel %vm1576, %v1587, %v1589
        %v1591 = vshll.u32 %v1551, 8
        %v1592 = vmul.u32.u64.compose %v1591, %v1590
        %v1593 = vextract.low.u32 %v1592
        %v1594 = vextract.high.u32 %v1592
        %v1595 = vmul.u32.u64.compose %v1591, %v1586
        %v1596 = vextract.low.u32 %v1595
        %v1597 = vextract.high.u32 %v1595
        %v1598 = vmul.u32 %v1591, %v1582
        %v1599 = vadd.s32 %v1594, %v1596
        %vm1600 = vc.u32 %v1594, %v1596
        %v1601 = vadd.s32 %v1597, 1
        %v1602 = vsel %vm1600, %v1601, %v1597
        %v1603 = vadd.s32 %v1598, %v1602
        %v1604 = vadd.s32 %v1603, 536870912
        %v1605 = vshrl.u32 %v1604, 30
        %v1606 = vshll.u32 %v1605, 30
        %v1607 = vsub.s32 %v1603, %v1606
        %vm1608 = vcmp.lt.s32.totalorder %v1607, 0
        %v1609 = vsub.s32 0, %v1607
        %v1610 = vsel %vm1608, %v1609, %v1607
        %v1611 = vclz %v1610
        %v1612 = vsub.s32 %v1611, 2
        %vm1613 = vcmp.gt.s32.totalorder 0, %v1612
        %v1614 = vsel %vm1613, 0, %v1612
        %v1615 = vsub.s32 32, %v1614
        %v1616 = vshll.u32 %v1607, %v1614
        %v1617 = vshrl.u32 %v1599, %v1615
        %v1618 = vor.u32 %v1616, %v1617
        %v1619 = vsub.s32 4294967266, %v1614
        %v1620 = vadd.s32 %v1619, 127
        %v1621 = vshll.u32 %v1620, 23
        %v1622 = vor.u32 4788187, %v1621
        %v1623 = vand.u32 2147483647, %v1622
        %v1625 = vcvt.s32.f32 %v1618
        %v1626 = vmul.f32 %v1625, %v1623
        %v1627 = vxor.u32 %v1626, 2147483648
        %v1628 = vsel %vm1545, %v1627, %v1626
        %v1629 = vsub.s32 4, %v1605
        %v1630 = vsel %vm1545, %v1629, %v1605
        %v1631 = vsel %vm1544, %v1525, %v1628
        %v1632 = vsel %vm1544, 0, %v1630
        %v1633 = vcosq.f32.pop %v1631
        %v1634 = vsinq.f32.pop %v1631
        %vm1635 = vweird.f32 %v1525
        %v1636 = vadd.s32 %v1632, 3
        %v1637 = vand.u32 %v1636, 3
        %vm1638 = vcmp.lt.s32.totalorder %v1637, 2
        %vm1639 = vcmp.eq.s32.totalorder %v1637, 0
        %v1640 = vxor.u32 %v1634, 2147483648
        %v1641 = vsel %vm1639, %v1633, %v1640
        %vm1642 = vcmp.eq.s32.totalorder %v1637, 2
        %v1643 = vxor.u32 %v1633, 2147483648
        %v1644 = vsel %vm1642, %v1643, %v1634
        %v1645 = vsel %vm1638, %v1641, %v1644
        %v1646 = vsel %vm1635, nan, %v1645
        %v1647 = vand.u32 2147483647, %v1530
        %vm1648 = vcmp.le.f32.partialorder %v1647, 0.7853982
        %vm1649 = vcmp.lt.s32.totalorder %v1530, 0
        %v1650 = vand.u32 %v1530, 2139095040
        %v1651 = vshrl.u32 %v1650, 23
        %v1652 = vsub.s32 %v1651, 127
        %v1653 = vand.u32 2147483647, %v1530
        %v1654 = vand.u32 %v1653, 8388607
        %v1655 = vor.u32 %v1654, 8388608
        %v1656 = vsub.s32 0, %v1655
        %v1657 = vadd.s32 %v1652, 1
        %vm1658 = vcmp.gt.s32.totalorder %v1657, 0
        %v1659 = vsel %vm1658, %v1657, 0
        %v1660 = vshrl.u32 %v1659, 5
        %v1661 = vand.u32 %v1659, 31
        %v1662 = vsub.s32 32, %v1661
        %v1663 = vshrl.u32 683565275, %v1662
        %v1664 = vshll.u32 683565275, %v1661
        %v1665 = vshrl.u32 2475754826, %v1662
        %v1666 = vor.u32 %v1664, %v1665
        %v1667 = vshll.u32 2475754826, %v1661
        %v1668 = vshrl.u32 2131351028, %v1662
        %v1669 = vor.u32 %v1667, %v1668
        %v1670 = vshll.u32 2131351028, %v1661
        %v1671 = vshrl.u32 2102212464, %v1662
        %v1672 = vor.u32 %v1670, %v1671
        %v1673 = vshll.u32 2102212464, %v1661
        %v1674 = vshrl.u32 920167782, %v1662
        %v1675 = vor.u32 %v1673, %v1674
        %v1676 = vshll.u32 920167782, %v1661
        %v1677 = vshrl.u32 1326507024, %v1662
        %v1678 = vor.u32 %v1676, %v1677
        %vm1679 = vcmp.lt.s32.totalorder %v1660, 1
        %vm1680 = vcmp.lt.s32.totalorder %v1660, 2
        %vm1681 = vcmp.lt.s32.totalorder %v1660, 3
        %vm1682 = vcmp.lt.s32.totalorder %v1660, 4
        %v1683 = vsel %vm1679, %v1663, %v1666
        %v1684 = vsel %vm1682, %v1672, 2102212464
        %v1685 = vsel %vm1681, %v1669, %v1684
        %v1686 = vsel %vm1680, %v1683, %v1685
        %v1687 = vsel %vm1679, %v1666, %v1669
        %v1688 = vsel %vm1682, %v1675, 920167782
        %v1689 = vsel %vm1681, %v1672, %v1688
        %v1690 = vsel %vm1680, %v1687, %v1689
        %v1691 = vsel %vm1679, %v1669, %v1672
        %v1692 = vsel %vm1682, %v1678, 1326507024
        %v1693 = vsel %vm1681, %v1675, %v1692
        %v1694 = vsel %vm1680, %v1691, %v1693
        %v1695 = vshll.u32 %v1655, 8
        %v1696 = vmul.u32.u64.compose %v1695, %v1694
        %v1697 = vextract.low.u32 %v1696
        %v1698 = vextract.high.u32 %v1696
        %v1699 = vmul.u32.u64.compose %v1695, %v1690
        %v1700 = vextract.low.u32 %v1699
        %v1701 = vextract.high.u32 %v1699
        %v1702 = vmul.u32 %v1695, %v1686
        %v1703 = vadd.s32 %v1698, %v1700
        %vm1704 = vc.u32 %v1698, %v1700
        %v1705 = vadd.s32 %v1701, 1
        %v1706 = vsel %vm1704, %v1705, %v1701
        %v1707 = vadd.s32 %v1702, %v1706
        %v1708 = vadd.s32 %v1707, 536870912
        %v1709 = vshrl.u32 %v1708, 30
        %v1710 = vshll.u32 %v1709, 30
        %v1711 = vsub.s32 %v1707, %v1710
        %vm1712 = vcmp.lt.s32.totalorder %v1711, 0
        %v1713 = vsub.s32 0, %v1711
        %v1714 = vsel %vm1712, %v1713, %v1711
        %v1715 = vclz %v1714
        %v1716 = vsub.s32 %v1715, 2
        %vm1717 = vcmp.gt.s32.totalorder 0, %v1716
        %v1718 = vsel %vm1717, 0, %v1716
        %v1719 = vsub.s32 32, %v1718
        %v1720 = vshll.u32 %v1711, %v1718
        %v1721 = vshrl.u32 %v1703, %v1719
        %v1722 = vor.u32 %v1720, %v1721
        %v1723 = vsub.s32 4294967266, %v1718
        %v1724 = vadd.s32 %v1723, 127
        %v1725 = vshll.u32 %v1724, 23
        %v1726 = vor.u32 4788187, %v1725
        %v1727 = vand.u32 2147483647, %v1726
        %v1729 = vcvt.s32.f32 %v1722
        %v1730 = vmul.f32 %v1729, %v1727
        %v1731 = vxor.u32 %v1730, 2147483648
        %v1732 = vsel %vm1649, %v1731, %v1730
        %v1733 = vsub.s32 4, %v1709
        %v1734 = vsel %vm1649, %v1733, %v1709
        %v1735 = vsel %vm1648, %v1530, %v1732
        %v1736 = vsel %vm1648, 0, %v1734
        %v1737 = vcosq.f32.pop %v1735
        %v1738 = vsinq.f32.pop %v1735
        %vm1739 = vweird.f32 %v1530
        %v1740 = vadd.s32 %v1736, 3
        %v1741 = vand.u32 %v1740, 3
        %vm1742 = vcmp.lt.s32.totalorder %v1741, 2
        %vm1743 = vcmp.eq.s32.totalorder %v1741, 0
        %v1744 = vxor.u32 %v1738, 2147483648
        %v1745 = vsel %vm1743, %v1737, %v1744
        %vm1746 = vcmp.eq.s32.totalorder %v1741, 2
        %v1747 = vxor.u32 %v1737, 2147483648
        %v1748 = vsel %vm1746, %v1747, %v1738
        %v1749 = vsel %vm1742, %v1745, %v1748
        %v1750 = vsel %vm1739, nan, %v1749
        %v1751 = vand.u32 2147483647, %v1535
        %vm1752 = vcmp.le.f32.partialorder %v1751, 0.7853982
        %vm1753 = vcmp.lt.s32.totalorder %v1535, 0
        %v1754 = vand.u32 %v1535, 2139095040
        %v1755 = vshrl.u32 %v1754, 23
        %v1756 = vsub.s32 %v1755, 127
        %v1757 = vand.u32 2147483647, %v1535
        %v1758 = vand.u32 %v1757, 8388607
        %v1759 = vor.u32 %v1758, 8388608
        %v1760 = vsub.s32 0, %v1759
        %v1761 = vadd.s32 %v1756, 1
        %vm1762 = vcmp.gt.s32.totalorder %v1761, 0
        %v1763 = vsel %vm1762, %v1761, 0
        %v1764 = vshrl.u32 %v1763, 5
        %v1765 = vand.u32 %v1763, 31
        %v1766 = vsub.s32 32, %v1765
        %v1767 = vshrl.u32 683565275, %v1766
        %v1768 = vshll.u32 683565275, %v1765
        %v1769 = vshrl.u32 2475754826, %v1766
        %v1770 = vor.u32 %v1768, %v1769
        %v1771 = vshll.u32 2475754826, %v1765
        %v1772 = vshrl.u32 2131351028, %v1766
        %v1773 = vor.u32 %v1771, %v1772
        %v1774 = vshll.u32 2131351028, %v1765
        %v1775 = vshrl.u32 2102212464, %v1766
        %v1776 = vor.u32 %v1774, %v1775
        %v1777 = vshll.u32 2102212464, %v1765
        %v1778 = vshrl.u32 920167782, %v1766
        %v1779 = vor.u32 %v1777, %v1778
        %v1780 = vshll.u32 920167782, %v1765
        %v1781 = vshrl.u32 1326507024, %v1766
        %v1782 = vor.u32 %v1780, %v1781
        %vm1783 = vcmp.lt.s32.totalorder %v1764, 1
        %vm1784 = vcmp.lt.s32.totalorder %v1764, 2
        %vm1785 = vcmp.lt.s32.totalorder %v1764, 3
        %vm1786 = vcmp.lt.s32.totalorder %v1764, 4
        %v1787 = vsel %vm1783, %v1767, %v1770
        %v1788 = vsel %vm1786, %v1776, 2102212464
        %v1789 = vsel %vm1785, %v1773, %v1788
        %v1790 = vsel %vm1784, %v1787, %v1789
        %v1791 = vsel %vm1783, %v1770, %v1773
        %v1792 = vsel %vm1786, %v1779, 920167782
        %v1793 = vsel %vm1785, %v1776, %v1792
        %v1794 = vsel %vm1784, %v1791, %v1793
        %v1795 = vsel %vm1783, %v1773, %v1776
        %v1796 = vsel %vm1786, %v1782, 1326507024
        %v1797 = vsel %vm1785, %v1779, %v1796
        %v1798 = vsel %vm1784, %v1795, %v1797
        %v1799 = vshll.u32 %v1759, 8
        %v1800 = vmul.u32.u64.compose %v1799, %v1798
        %v1801 = vextract.low.u32 %v1800
        %v1802 = vextract.high.u32 %v1800
        %v1803 = vmul.u32.u64.compose %v1799, %v1794
        %v1804 = vextract.low.u32 %v1803
        %v1805 = vextract.high.u32 %v1803
        %v1806 = vmul.u32 %v1799, %v1790
        %v1807 = vadd.s32 %v1802, %v1804
        %vm1808 = vc.u32 %v1802, %v1804
        %v1809 = vadd.s32 %v1805, 1
        %v1810 = vsel %vm1808, %v1809, %v1805
        %v1811 = vadd.s32 %v1806, %v1810
        %v1812 = vadd.s32 %v1811, 536870912
        %v1813 = vshrl.u32 %v1812, 30
        %v1814 = vshll.u32 %v1813, 30
        %v1815 = vsub.s32 %v1811, %v1814
        %vm1816 = vcmp.lt.s32.totalorder %v1815, 0
        %v1817 = vsub.s32 0, %v1815
        %v1818 = vsel %vm1816, %v1817, %v1815
        %v1819 = vclz %v1818
        %v1820 = vsub.s32 %v1819, 2
        %vm1821 = vcmp.gt.s32.totalorder 0, %v1820
        %v1822 = vsel %vm1821, 0, %v1820
        %v1823 = vsub.s32 32, %v1822
        %v1824 = vshll.u32 %v1815, %v1822
        %v1825 = vshrl.u32 %v1807, %v1823
        %v1826 = vor.u32 %v1824, %v1825
        %v1827 = vsub.s32 4294967266, %v1822
        %v1828 = vadd.s32 %v1827, 127
        %v1829 = vshll.u32 %v1828, 23
        %v1830 = vor.u32 4788187, %v1829
        %v1831 = vand.u32 2147483647, %v1830
        %v1833 = vcvt.s32.f32 %v1826
        %v1834 = vmul.f32 %v1833, %v1831
        %v1835 = vxor.u32 %v1834, 2147483648
        %v1836 = vsel %vm1753, %v1835, %v1834
        %v1837 = vsub.s32 4, %v1813
        %v1838 = vsel %vm1753, %v1837, %v1813
        %v1839 = vsel %vm1752, %v1535, %v1836
        %v1840 = vsel %vm1752, 0, %v1838
        %v1841 = vcosq.f32.pop %v1839
        %v1842 = vsinq.f32.pop %v1839
        %vm1843 = vweird.f32 %v1535
        %v1844 = vadd.s32 %v1840, 3
        %v1845 = vand.u32 %v1844, 3
        %vm1846 = vcmp.lt.s32.totalorder %v1845, 2
        %vm1847 = vcmp.eq.s32.totalorder %v1845, 0
        %v1848 = vxor.u32 %v1842, 2147483648
        %v1849 = vsel %vm1847, %v1841, %v1848
        %vm1850 = vcmp.eq.s32.totalorder %v1845, 2
        %v1851 = vxor.u32 %v1841, 2147483648
        %v1852 = vsel %vm1850, %v1851, %v1842
        %v1853 = vsel %vm1846, %v1849, %v1852
        %v1854 = vsel %vm1843, nan, %v1853
        %v1855 = vand.u32 2147483647, %v1540
        %vm1856 = vcmp.le.f32.partialorder %v1855, 0.7853982
        %vm1857 = vcmp.lt.s32.totalorder %v1540, 0
        %v1858 = vand.u32 %v1540, 2139095040
        %v1859 = vshrl.u32 %v1858, 23
        %v1860 = vsub.s32 %v1859, 127
        %v1861 = vand.u32 2147483647, %v1540
        %v1862 = vand.u32 %v1861, 8388607
        %v1863 = vor.u32 %v1862, 8388608
        %v1864 = vsub.s32 0, %v1863
        %v1865 = vadd.s32 %v1860, 1
        %vm1866 = vcmp.gt.s32.totalorder %v1865, 0
        %v1867 = vsel %vm1866, %v1865, 0
        %v1868 = vshrl.u32 %v1867, 5
        %v1869 = vand.u32 %v1867, 31
        %v1870 = vsub.s32 32, %v1869
        %v1871 = vshrl.u32 683565275, %v1870
        %v1872 = vshll.u32 683565275, %v1869
        %v1873 = vshrl.u32 2475754826, %v1870
        %v1874 = vor.u32 %v1872, %v1873
        %v1875 = vshll.u32 2475754826, %v1869
        %v1876 = vshrl.u32 2131351028, %v1870
        %v1877 = vor.u32 %v1875, %v1876
        %v1878 = vshll.u32 2131351028, %v1869
        %v1879 = vshrl.u32 2102212464, %v1870
        %v1880 = vor.u32 %v1878, %v1879
        %v1881 = vshll.u32 2102212464, %v1869
        %v1882 = vshrl.u32 920167782, %v1870
        %v1883 = vor.u32 %v1881, %v1882
        %v1884 = vshll.u32 920167782, %v1869
        %v1885 = vshrl.u32 1326507024, %v1870
        %v1886 = vor.u32 %v1884, %v1885
        %vm1887 = vcmp.lt.s32.totalorder %v1868, 1
        %vm1888 = vcmp.lt.s32.totalorder %v1868, 2
        %vm1889 = vcmp.lt.s32.totalorder %v1868, 3
        %vm1890 = vcmp.lt.s32.totalorder %v1868, 4
        %v1891 = vsel %vm1887, %v1871, %v1874
        %v1892 = vsel %vm1890, %v1880, 2102212464
        %v1893 = vsel %vm1889, %v1877, %v1892
        %v1894 = vsel %vm1888, %v1891, %v1893
        %v1895 = vsel %vm1887, %v1874, %v1877
        %v1896 = vsel %vm1890, %v1883, 920167782
        %v1897 = vsel %vm1889, %v1880, %v1896
        %v1898 = vsel %vm1888, %v1895, %v1897
        %v1899 = vsel %vm1887, %v1877, %v1880
        %v1900 = vsel %vm1890, %v1886, 1326507024
        %v1901 = vsel %vm1889, %v1883, %v1900
        %v1902 = vsel %vm1888, %v1899, %v1901
        %v1903 = vshll.u32 %v1863, 8
        %v1904 = vmul.u32.u64.compose %v1903, %v1902
        %v1905 = vextract.low.u32 %v1904
        %v1906 = vextract.high.u32 %v1904
        %v1907 = vmul.u32.u64.compose %v1903, %v1898
        %v1908 = vextract.low.u32 %v1907
        %v1909 = vextract.high.u32 %v1907
        %v1910 = vmul.u32 %v1903, %v1894
        %v1911 = vadd.s32 %v1906, %v1908
        %vm1912 = vc.u32 %v1906, %v1908
        %v1913 = vadd.s32 %v1909, 1
        %v1914 = vsel %vm1912, %v1913, %v1909
        %v1915 = vadd.s32 %v1910, %v1914
        %v1916 = vadd.s32 %v1915, 536870912
        %v1917 = vshrl.u32 %v1916, 30
        %v1918 = vshll.u32 %v1917, 30
        %v1919 = vsub.s32 %v1915, %v1918
        %vm1920 = vcmp.lt.s32.totalorder %v1919, 0
        %v1921 = vsub.s32 0, %v1919
        %v1922 = vsel %vm1920, %v1921, %v1919
        %v1923 = vclz %v1922
        %v1924 = vsub.s32 %v1923, 2
        %vm1925 = vcmp.gt.s32.totalorder 0, %v1924
        %v1926 = vsel %vm1925, 0, %v1924
        %v1927 = vsub.s32 32, %v1926
        %v1928 = vshll.u32 %v1919, %v1926
        %v1929 = vshrl.u32 %v1911, %v1927
        %v1930 = vor.u32 %v1928, %v1929
        %v1931 = vsub.s32 4294967266, %v1926
        %v1932 = vadd.s32 %v1931, 127
        %v1933 = vshll.u32 %v1932, 23
        %v1934 = vor.u32 4788187, %v1933
        %v1935 = vand.u32 2147483647, %v1934
        %v1937 = vcvt.s32.f32 %v1930
        %v1938 = vmul.f32 %v1937, %v1935
        %v1939 = vxor.u32 %v1938, 2147483648
        %v1940 = vsel %vm1857, %v1939, %v1938
        %v1941 = vsub.s32 4, %v1917
        %v1942 = vsel %vm1857, %v1941, %v1917
        %v1943 = vsel %vm1856, %v1540, %v1940
        %v1944 = vsel %vm1856, 0, %v1942
        %v1945 = vcosq.f32.pop %v1943
        %v1946 = vsinq.f32.pop %v1943
        %vm1947 = vweird.f32 %v1540
        %v1948 = vadd.s32 %v1944, 3
        %v1949 = vand.u32 %v1948, 3
        %vm1950 = vcmp.lt.s32.totalorder %v1949, 2
        %vm1951 = vcmp.eq.s32.totalorder %v1949, 0
        %v1952 = vxor.u32 %v1946, 2147483648
        %v1953 = vsel %vm1951, %v1945, %v1952
        %vm1954 = vcmp.eq.s32.totalorder %v1949, 2
        %v1955 = vxor.u32 %v1945, 2147483648
        %v1956 = vsel %vm1954, %v1955, %v1946
        %v1957 = vsel %vm1950, %v1953, %v1956
        %v1958 = vsel %vm1947, nan, %v1957
        %v1959 = vld [vmem:[%s7] sm:$0xff]
        %v1960 = vld [vmem:[%s7 + $0x8] sm:$0xff]
        %v1961 = vld [vmem:[%s7 + $0x10] sm:$0xff]
        %v1962 = vld [vmem:[%s7 + $0x18] sm:$0xff]
        %v1963 = vld [vmem:[#allocation2] sm:$0x1]
        %1965 = vset.pattern.permute.xlu0 0
        %1966 = vperm.xlu0 %1965, %v1959
        %v1967 = vpop.permute.xlu0 %1966
        %1970 = vset.pattern.permute.xlu0 0
        %1971 = vperm.xlu0 %1970, %v1960
        %v1972 = vpop.permute.xlu0 %1971
        %1975 = vset.pattern.permute.xlu0 0
        %1976 = vperm.xlu0 %1975, %v1961
        %v1977 = vpop.permute.xlu0 %1976
        %1980 = vset.pattern.permute.xlu0 0
        %1981 = vperm.xlu0 %1980, %v1962
        %v1982 = vpop.permute.xlu0 %1981
        %v1984 = vmul.f32 %v1646, %v1967
        %v1985 = vmul.f32 %v1750, %v1972
        %v1986 = vmul.f32 %v1854, %v1977
        %v1987 = vmul.f32 %v1958, %v1982
        %v1988 = vadd.f32 %v1984, %v1985
        %v1989 = vadd.f32 %v1988, %v1986
        %v1990 = vadd.f32 %v1989, %v1987
        %v1991 = vrot.slane %v1990, 4
        %v1992 = vadd.f32 %v1990, %v1991
        %v1993 = vrot.slane %v1992, 2
        %v1994 = vadd.f32 %v1992, %v1993
        %v1995 = vrot.slane %v1994, 1
        %v1996 = vadd.f32 %v1994, %v1995
        %1998 = vset.pattern.permute.xlu0 0
        %1999 = vperm.xlu0 %1998, %v1963
        %v2000 = vpop.permute.xlu0 %1999
        %v2002 = vlaneseq
        %v2003 = vshrl.u32 %v2002, 7
        %v2004 = vsub.s32 0, %v2003
        %v2005 = vrot.slane %v2000, %v2004
        %v2006 = vadd.f32 %v1996, %v2005
        %2007 = vst [vmem:[%s324] sm:$0x1] %v2006
        %s2008 = sand.u32 %s227, 1
        %s2009 = scalar_lea.sflag [#allocation4], %s2008
        %s2010 = sand.u32 %s227, 1
        %s2011 = scalar_lea.vmem [#allocation3], %s2010
        // Predicated region
        $region57: #{tpu_custom_call.1} parent=55 // pred_check
          %p2012 = pneg %p237
        $region58: #{tpu_custom_call.1} parent=55 // pred_check_branch
          %2014 = sbr.rel (%p2012) target = $region60
        $region59: #{tpu_custom_call.1} parent=55 // pred_region
          %s2016 = ssub.s32 16, 16
          %2017 = vsyncadd %s2009, %s2016
          %s2018 = smul.addr %s25, 16
          %s2019 = scalar_lea.hbm %s9, %s2018
          %s2021 = sshll.u32 %s2011, 4
          %s2022 = int_to_ptr.vmem [resolvable:$true] %s2021
          %2024 = dma.vmem_to_hbm [thread:$0]  %s2022, 16, %s2019, %s2009
        $region60: #{tpu_custom_call.1} parent=55 // pred_fallthru
          _
      $region56: #{tpu_custom_call.1} parent=5 // pred_fallthru
        _
      %p2025 = scmp.le.s32.totalorder 2, %s20
      // Predicated region
      $region61: #{tpu_custom_call.1} parent=5 // pred_check
        %p2026 = pneg %p2025
      $region62: #{tpu_custom_call.1} parent=5 // pred_check_branch
        %2028 = sbr.rel (%p2026) target = $region64
      $region63: #{tpu_custom_call.1} parent=5 // pred_region
        %s2029 = ssub.s32 %s20, 2
        // Predicated region
        $region65: #{tpu_custom_call.1} parent=63 // pred_check
          %p2030 = pneg %p243
        $region66: #{tpu_custom_call.1} parent=63 // pred_check_branch
          %2032 = sbr.rel (%p2030) target = $region68
        $region67: #{tpu_custom_call.1} parent=63 // pred_region
          %s2033 = sand.u32 %s228, 1
          %s2034 = scalar_lea.sflag [#allocation4], %s2033
          %s2035 = sand.u32 %s228, 1
          %s2036 = scalar_lea.vmem [#allocation3], %s2035
          %2037 = dma.done %s2034, 16
        $region68: #{tpu_custom_call.1} parent=63 // pred_fallthru
          _
      $region64: #{tpu_custom_call.1} parent=5 // pred_fallthru
        _
    $region6: #{tpu_custom_call.1} parent=1 // loop_footer
      %s24 = sadd.s32 1, %s20
    $region7: #{tpu_custom_call.1} parent=1 // loop_footer_branch
      %19 = sbr.rel target = $region3
    $region8: #{tpu_custom_call.1} parent=1 // loop_exit
      _
    %2038 = vsyncpa [#allocation4], 1
    %s2039 = scalar_lea.sflag [#allocation4], 1
    %2040 = vsyncpa %s2039, 1

</llo_original>
